<compile_context>
chip_gen: v7x
topology: tpu7x:2x2x1
jax: 0.10.0
libtpu: 0.0.40
codegen_flags: <defaults>
</compile_context>

<pallas_src>
import functools

import jax
import jax.numpy as jnp
from jax.experimental import pallas as pl
from jax.experimental.pallas import tpu as pltpu


def _round_up(x, m):
    return ((x + m - 1) // m) * m


def gcn_kernel(x_ref, adj_ref, w1_ref, b1_ref, q_ref, bp_ref, o_ref, *,
               prop_via_mxu):
    """One grid step: a block of TB graphs, fully resident in VMEM, all f32."""
    TB, Np, _ = adj_ref.shape
    Hp = w1_ref.shape[1]

    # gc1 support: one lane-dense MXU matmul covering every node row in the block.
    support1 = jnp.dot(x_ref[...], w1_ref[...],
                       preferred_element_type=jnp.float32)          # (TB*Np, Hp)
    s3 = support1.reshape(TB, Np, Hp)   # sublane-tile-aligned split (Np % 8 == 0)

    adj = adj_ref[...]                   # (TB, Np, Np)

    def propagate(feat):
        # out[b, n, :] = sum_m adj[b, n, m] * feat[b, m, :]
        if prop_via_mxu:
            # larger graphs: batched MXU matmuls.
            return jnp.einsum('bnm,bmh->bnh', adj, feat,
                              preferred_element_type=jnp.float32)
        # small graphs: Np broadcast-FMAs on the VPU (keeps the MXU free of
        # tiny near-empty matmuls; slices are rank-preserving -> no relayout).
        acc = jnp.zeros((TB, Np, Hp), jnp.float32)
        for m in range(Np):
            acc = acc + adj[:, :, m:m + 1] * feat[:, m:m + 1, :]
        return acc

    # GraphConvolution 1: relu(adj @ (x @ W1) + b1).
    h = jnp.maximum(propagate(s3) + b1_ref[...], 0.0)
    # TODO(synk): F.dropout(p=0.5) == identity (eval mode, no RNG mask).

    # GraphConvolution 2 + linear readout (W2, b2, Wp, bp folded into q/bp_eff):
    #   flatten(adj @ h @ W2 + b2) @ Wp + bp == flatten(adj @ h) @ Q + bp_eff
    u = propagate(h)                                                 # (TB, Np, Hp)
    out = jnp.dot(u.reshape(TB, Np * Hp), q_ref[...],
                  preferred_element_type=jnp.float32)                # (TB, noutp)
    o_ref[...] = out + bp_ref[...]


def _choose_block_b(B, Np, Fp, *, vmem_budget_bytes=4 << 20, min_steps=2):
    """Graphs per grid step: multiple of 8 (clean (8,128) output stores), small
    enough that double-buffered per-step inputs fit the VMEM budget, and giving
    a grid of >= min_steps so pipelining / megacore sharding have work."""
    per_graph = 4 * Np * (Fp + Np)                     # f32 node rows + adjacency
    bb_budget = max(1, vmem_budget_bytes // (2 * per_graph))
    bb_steps = -(-B // min_steps)                      # ceil(B / min_steps)
    bb = min(bb_budget, bb_steps)
    bb = max(8, (bb // 8) * 8)                         # >= 8 and multiple of 8
    return int(bb)


def gcn_forward(xs, adjs, params, *, block_b=None, min_steps=2):
    """GCN forward pass (eval mode) via a single Pallas kernel over batch blocks."""
    w1, b1, w2, b2, wp_flat, bp = params
    B, N, F = xs.shape
    H = w1.shape[1]
    C = w2.shape[1]
    nout = bp.shape[1]
    f32 = jnp.float32

    # ---- lane/sublane-dense padded dims ------------------------------------
    Np = _round_up(N, 8)
    Fp = _round_up(F, 128)
    Hp = _round_up(H, 128)
    noutp = _round_up(nout, 128)

    # ---- host-side folding: gc2 + linear readout ---------------------------
    # Q[n,k,o] = sum_c W2[k,c] * Wp[o, n*C+c];  bp_eff = bp + flatten(b2) @ Wp^T
    wp3 = wp_flat.reshape(N, C, nout)
    q = jnp.einsum('kc,nco->nko', w2, wp3)                         # (N, H, nout)
    bp_eff = bp + jnp.einsum('c,nco->o', b2[0], wp3)[None, :]      # (1, nout)

    # ---- zero-pad weights / biases (padding is inert, see header) ----------
    q_pad = jnp.zeros((Np, Hp, noutp), f32).at[:N, :H, :nout].set(q.astype(f32))
    q_flat = q_pad.reshape(Np * Hp, noutp)
    bp_pad = jnp.zeros((1, noutp), f32).at[:, :nout].set(bp_eff.astype(f32))
    w1_pad = jnp.zeros((Fp, Hp), f32).at[:F, :H].set(w1.astype(f32))
    b1_pad = jnp.zeros((1, Hp), f32).at[:, :H].set(b1.astype(f32))

    # ---- batch blocking -----------------------------------------------------
    if block_b is None:
        block_b = _choose_block_b(B, Np, Fp, min_steps=min_steps)
    assert block_b % 8 == 0, "block_b must be a multiple of 8 for dense stores"
    num_steps = max(min_steps, -(-B // block_b))
    Bp = block_b * num_steps

    xs_pad = jnp.zeros((Bp, Np, Fp), f32).at[:B, :N, :F].set(xs.astype(f32))
    adj_pad = jnp.zeros((Bp, Np, Np), f32).at[:B, :N, :N].set(adjs.astype(f32))
    xs_flat = xs_pad.reshape(Bp * Np, Fp)        # pre-flattened node rows

    prop_via_mxu = Np > 32                       # small graphs -> VPU FMA path

    # ---- VMEM limit / cost estimate ----------------------------------------
    resident_bytes = 4 * (Fp * Hp + Hp + Np * Hp * noutp + noutp)
    per_step_bytes = 4 * (block_b * Np * Fp + block_b * Np * Np + block_b * noutp)
    vmem_limit = int(min(max(resident_bytes + 4 * per_step_bytes + (2 << 20),
                             8 << 20), 64 << 20))   # v7x VMEM is 64 MiB total
    flops = (2 * Bp * Np * Fp * Hp                   # x @ W1
             + 2 * 2 * Bp * Np * Np * Hp             # two adjacency propagations
             + 2 * Bp * Np * Hp * noutp)             # folded readout
    bytes_accessed = int(4 * (Bp * Np * Fp + Bp * Np * Np + Bp * noutp)
                         + resident_bytes)

    kernel = pl.pallas_call(
        functools.partial(gcn_kernel, prop_via_mxu=prop_via_mxu),
        out_shape=jax.ShapeDtypeStruct((Bp, noutp), f32),
        grid_spec=pltpu.PrefetchScalarGridSpec(
            num_scalar_prefetch=0,
            grid=(num_steps,),
            in_specs=[
                pl.BlockSpec((block_b * Np, Fp), lambda i: (i, 0)),   # node rows
                pl.BlockSpec((block_b, Np, Np), lambda i: (i, 0, 0)),  # adjacency
                pl.BlockSpec((Fp, Hp), lambda i: (0, 0)),              # W1 (resident)
                pl.BlockSpec((1, Hp), lambda i: (0, 0)),               # b1
                # NOTE: for very large N*H, stream q_flat from HBM (pl.ANY +
                # manual copies) instead of keeping it fully resident.
                pl.BlockSpec((Np * Hp, noutp), lambda i: (0, 0)),      # folded Q
                pl.BlockSpec((1, noutp), lambda i: (0, 0)),            # bp_eff
            ],
            out_specs=pl.BlockSpec((block_b, noutp), lambda i: (i, 0)),
        ),
        compiler_params=pltpu.CompilerParams(
            dimension_semantics=("parallel",),
            vmem_limit_bytes=vmem_limit),
        cost_estimate=pl.CostEstimate(flops=flops, transcendentals=0,
                                      bytes_accessed=bytes_accessed),
    )
    out = kernel(xs_flat, adj_pad, w1_pad, b1_pad, q_flat, bp_pad)
    return out[:B, :nout]


def gcn_reference(xs, adjs, params):
    """Pure-JAX f32 reference matching the PyTorch forward (eval mode)."""
    w1, b1, w2, b2, wp_flat, bp = params
    B = xs.shape[0]
    outs = []
    for i in range(B):
        x, adj = xs[i], adjs[i]
        h = jnp.maximum(adj @ (x @ w1) + b1[0], 0.0)
        h2 = adj @ (h @ w2) + b2[0]
        flat = h2.reshape(-1)                     # row-major flatten (N*C,)
        outs.append(flat @ wp_flat + bp[0])       # wp_flat == predict.weight.T
    return jnp.stack(outs, axis=0)


def init_params(key, nfeat, nhid, nclass, node_num, nout):
    """Deterministic synthetic init matching the PyTorch parameter shapes."""
    k1, k2, k3, k4, k5, k6 = jax.random.split(key, 6)
    stdv1 = 1.0 / jnp.sqrt(float(nhid))
    stdv2 = 1.0 / jnp.sqrt(float(nclass))
    w1 = jax.random.uniform(k1, (nfeat, nhid), jnp.float32, -stdv1, stdv1)
    b1 = jax.random.uniform(k2, (1, nhid), jnp.float32, -stdv1, stdv1)
    w2 = jax.random.uniform(k3, (nhid, nclass), jnp.float32, -stdv2, stdv2)
    b2 = jax.random.uniform(k4, (1, nclass), jnp.float32, -stdv2, stdv2)
    # nn.Linear(nclass * node_num, nout): weight (nout, nclass*node_num)
    bound = 1.0 / jnp.sqrt(float(nclass * node_num))
    wp = jax.random.uniform(k5, (nout, nclass * node_num), jnp.float32,
                            -bound, bound)
    bp = jax.random.uniform(k6, (1, nout), jnp.float32, -bound, bound)
    wp_flat = wp.T                                 # (node_num*nclass, nout)
    return (w1, b1, w2, b2, wp_flat, bp)


if __name__ == "__main__":
    # Small shapes consistent with the module.
    B, node_num = 4, 8
    nfeat, nhid, nclass, nout = 16, 32, 8, 4

    key = jax.random.PRNGKey(0)
    kx, ka, kp = jax.random.split(key, 3)

    xs = jax.random.normal(kx, (B, node_num, nfeat), jnp.float32)
    adjs = jax.random.uniform(ka, (B, node_num, node_num), jnp.float32)
    adjs = 0.5 * (adjs + jnp.swapaxes(adjs, -1, -2))   # symmetric synthetic adjacency

    params = init_params(kp, nfeat, nhid, nclass, node_num, nout)

    out = jax.block_until_ready(gcn_forward(xs, adjs, params))
    ref = gcn_reference(xs, adjs, params)

    assert out.shape == (B, nout)
    # All-f32 path (f32 MXU accumulation); only reassociation-level differences.
    assert jnp.allclose(out, ref, atol=1e-3, rtol=1e-3), (out, ref)

    print("KERNEL_OK")
</pallas_src>

<mosaic_0001>
module attributes {stable_mosaic.version = 11 : i64} {
  func.func @gcn_kernel(%arg0: i32, %arg1: memref<64x128xf32, #tpu.memory_space<vmem>>, %arg2: memref<8x8x8xf32, #tpu.memory_space<vmem>>, %arg3: memref<128x128xf32, #tpu.memory_space<vmem>>, %arg4: memref<1x128xf32, #tpu.memory_space<vmem>>, %arg5: memref<1024x128xf32, #tpu.memory_space<vmem>>, %arg6: memref<1x128xf32, #tpu.memory_space<vmem>>, %arg7: memref<8x128xf32, #tpu.memory_space<vmem>>) attributes {dimension_semantics = [#tpu.dimension_semantics<parallel>], iteration_bounds = array<i64: 2>, scalar_prefetch = 0 : i64, scratch_operands = 0 : i64, tpu.core_type = #tpu.core_type<tc>, window_params = [{transform_indices = @transform_0, window_bounds = array<i64: 64, 128>}, {transform_indices = @transform_1, window_bounds = array<i64: 8, 8, 8>}, {pipeline_mode = #tpu.pipeline_mode<synchronous>, transform_indices = @transform_2, window_bounds = array<i64: 128, 128>}, {pipeline_mode = #tpu.pipeline_mode<synchronous>, transform_indices = @transform_3, window_bounds = array<i64: 1, 128>}, {pipeline_mode = #tpu.pipeline_mode<synchronous>, transform_indices = @transform_4, window_bounds = array<i64: 1024, 128>}, {pipeline_mode = #tpu.pipeline_mode<synchronous>, transform_indices = @transform_5, window_bounds = array<i64: 1, 128>}, {transform_indices = @transform_6, window_bounds = array<i64: 8, 128>}]} {
    %c0 = arith.constant 0 : index
    %c0_0 = arith.constant 0 : index
    %0 = vector.load %arg1[%c0, %c0_0] : memref<64x128xf32, #tpu.memory_space<vmem>>, vector<64x128xf32>
    %c0_1 = arith.constant 0 : index
    %c0_2 = arith.constant 0 : index
    %1 = vector.load %arg3[%c0_1, %c0_2] : memref<128x128xf32, #tpu.memory_space<vmem>>, vector<128x128xf32>
    %cst = arith.constant dense<0.000000e+00> : vector<64x128xf32>
    %2 = tpu.matmul %0, %1, %cst {dimension_numbers = #tpu.dot_dimension_numbers<[1], [0], [0], [1], [0, 0, 1, 1], [], []>} : vector<64x128xf32>, vector<128x128xf32>, vector<64x128xf32> -> vector<64x128xf32>
    %3 = vector.shape_cast %2 : vector<64x128xf32> to vector<8x8x128xf32>
    %c0_3 = arith.constant 0 : index
    %c0_4 = arith.constant 0 : index
    %c0_5 = arith.constant 0 : index
    %4 = vector.load %arg2[%c0_3, %c0_4, %c0_5] : memref<8x8x8xf32, #tpu.memory_space<vmem>>, vector<8x8x8xf32>
    %cst_6 = arith.constant 0.000000e+00 : f32
    %5 = vector.broadcast %cst_6 : f32 to vector<8x8x128xf32>
    %6 = vector.extract_strided_slice %4 {offsets = [0, 0, 0], sizes = [8, 8, 1], strides = [1, 1, 1]} : vector<8x8x8xf32> to vector<8x8x1xf32>
    %7 = vector.extract_strided_slice %3 {offsets = [0, 0, 0], sizes = [8, 1, 128], strides = [1, 1, 1]} : vector<8x8x128xf32> to vector<8x1x128xf32>
    %8 = vector.broadcast %6 : vector<8x8x1xf32> to vector<8x8x128xf32>
    %9 = vector.broadcast %7 : vector<8x1x128xf32> to vector<8x8x128xf32>
    %10 = arith.mulf %8, %9 : vector<8x8x128xf32>
    %11 = arith.addf %5, %10 : vector<8x8x128xf32>
    %12 = vector.extract_strided_slice %4 {offsets = [0, 0, 1], sizes = [8, 8, 1], strides = [1, 1, 1]} : vector<8x8x8xf32> to vector<8x8x1xf32>
    %13 = vector.extract_strided_slice %3 {offsets = [0, 1, 0], sizes = [8, 1, 128], strides = [1, 1, 1]} : vector<8x8x128xf32> to vector<8x1x128xf32>
    %14 = vector.broadcast %12 : vector<8x8x1xf32> to vector<8x8x128xf32>
    %15 = vector.broadcast %13 : vector<8x1x128xf32> to vector<8x8x128xf32>
    %16 = arith.mulf %14, %15 : vector<8x8x128xf32>
    %17 = arith.addf %11, %16 : vector<8x8x128xf32>
    %18 = vector.extract_strided_slice %4 {offsets = [0, 0, 2], sizes = [8, 8, 1], strides = [1, 1, 1]} : vector<8x8x8xf32> to vector<8x8x1xf32>
    %19 = vector.extract_strided_slice %3 {offsets = [0, 2, 0], sizes = [8, 1, 128], strides = [1, 1, 1]} : vector<8x8x128xf32> to vector<8x1x128xf32>
    %20 = vector.broadcast %18 : vector<8x8x1xf32> to vector<8x8x128xf32>
    %21 = vector.broadcast %19 : vector<8x1x128xf32> to vector<8x8x128xf32>
    %22 = arith.mulf %20, %21 : vector<8x8x128xf32>
    %23 = arith.addf %17, %22 : vector<8x8x128xf32>
    %24 = vector.extract_strided_slice %4 {offsets = [0, 0, 3], sizes = [8, 8, 1], strides = [1, 1, 1]} : vector<8x8x8xf32> to vector<8x8x1xf32>
    %25 = vector.extract_strided_slice %3 {offsets = [0, 3, 0], sizes = [8, 1, 128], strides = [1, 1, 1]} : vector<8x8x128xf32> to vector<8x1x128xf32>
    %26 = vector.broadcast %24 : vector<8x8x1xf32> to vector<8x8x128xf32>
    %27 = vector.broadcast %25 : vector<8x1x128xf32> to vector<8x8x128xf32>
    %28 = arith.mulf %26, %27 : vector<8x8x128xf32>
    %29 = arith.addf %23, %28 : vector<8x8x128xf32>
    %30 = vector.extract_strided_slice %4 {offsets = [0, 0, 4], sizes = [8, 8, 1], strides = [1, 1, 1]} : vector<8x8x8xf32> to vector<8x8x1xf32>
    %31 = vector.extract_strided_slice %3 {offsets = [0, 4, 0], sizes = [8, 1, 128], strides = [1, 1, 1]} : vector<8x8x128xf32> to vector<8x1x128xf32>
    %32 = vector.broadcast %30 : vector<8x8x1xf32> to vector<8x8x128xf32>
    %33 = vector.broadcast %31 : vector<8x1x128xf32> to vector<8x8x128xf32>
    %34 = arith.mulf %32, %33 : vector<8x8x128xf32>
    %35 = arith.addf %29, %34 : vector<8x8x128xf32>
    %36 = vector.extract_strided_slice %4 {offsets = [0, 0, 5], sizes = [8, 8, 1], strides = [1, 1, 1]} : vector<8x8x8xf32> to vector<8x8x1xf32>
    %37 = vector.extract_strided_slice %3 {offsets = [0, 5, 0], sizes = [8, 1, 128], strides = [1, 1, 1]} : vector<8x8x128xf32> to vector<8x1x128xf32>
    %38 = vector.broadcast %36 : vector<8x8x1xf32> to vector<8x8x128xf32>
    %39 = vector.broadcast %37 : vector<8x1x128xf32> to vector<8x8x128xf32>
    %40 = arith.mulf %38, %39 : vector<8x8x128xf32>
    %41 = arith.addf %35, %40 : vector<8x8x128xf32>
    %42 = vector.extract_strided_slice %4 {offsets = [0, 0, 6], sizes = [8, 8, 1], strides = [1, 1, 1]} : vector<8x8x8xf32> to vector<8x8x1xf32>
    %43 = vector.extract_strided_slice %3 {offsets = [0, 6, 0], sizes = [8, 1, 128], strides = [1, 1, 1]} : vector<8x8x128xf32> to vector<8x1x128xf32>
    %44 = vector.broadcast %42 : vector<8x8x1xf32> to vector<8x8x128xf32>
    %45 = vector.broadcast %43 : vector<8x1x128xf32> to vector<8x8x128xf32>
    %46 = arith.mulf %44, %45 : vector<8x8x128xf32>
    %47 = arith.addf %41, %46 : vector<8x8x128xf32>
    %48 = vector.extract_strided_slice %4 {offsets = [0, 0, 7], sizes = [8, 8, 1], strides = [1, 1, 1]} : vector<8x8x8xf32> to vector<8x8x1xf32>
    %49 = vector.extract_strided_slice %3 {offsets = [0, 7, 0], sizes = [8, 1, 128], strides = [1, 1, 1]} : vector<8x8x128xf32> to vector<8x1x128xf32>
    %50 = vector.broadcast %48 : vector<8x8x1xf32> to vector<8x8x128xf32>
    %51 = vector.broadcast %49 : vector<8x1x128xf32> to vector<8x8x128xf32>
    %52 = arith.mulf %50, %51 : vector<8x8x128xf32>
    %53 = arith.addf %47, %52 : vector<8x8x128xf32>
    %c0_7 = arith.constant 0 : index
    %c0_8 = arith.constant 0 : index
    %54 = vector.load %arg4[%c0_7, %c0_8] : memref<1x128xf32, #tpu.memory_space<vmem>>, vector<1x128xf32>
    %55 = vector.shape_cast %54 : vector<1x128xf32> to vector<1x1x128xf32>
    %56 = vector.broadcast %55 : vector<1x1x128xf32> to vector<8x8x128xf32>
    %57 = arith.addf %53, %56 : vector<8x8x128xf32>
    %cst_9 = arith.constant 0.000000e+00 : f32
    %58 = vector.broadcast %cst_9 : f32 to vector<8x8x128xf32>
    %59 = arith.maximumf %57, %58 : vector<8x8x128xf32>
    %cst_10 = arith.constant 0.000000e+00 : f32
    %60 = vector.broadcast %cst_10 : f32 to vector<8x8x128xf32>
    %61 = vector.extract_strided_slice %4 {offsets = [0, 0, 0], sizes = [8, 8, 1], strides = [1, 1, 1]} : vector<8x8x8xf32> to vector<8x8x1xf32>
    %62 = vector.extract_strided_slice %59 {offsets = [0, 0, 0], sizes = [8, 1, 128], strides = [1, 1, 1]} : vector<8x8x128xf32> to vector<8x1x128xf32>
    %63 = vector.broadcast %61 : vector<8x8x1xf32> to vector<8x8x128xf32>
    %64 = vector.broadcast %62 : vector<8x1x128xf32> to vector<8x8x128xf32>
    %65 = arith.mulf %63, %64 : vector<8x8x128xf32>
    %66 = arith.addf %60, %65 : vector<8x8x128xf32>
    %67 = vector.extract_strided_slice %4 {offsets = [0, 0, 1], sizes = [8, 8, 1], strides = [1, 1, 1]} : vector<8x8x8xf32> to vector<8x8x1xf32>
    %68 = vector.extract_strided_slice %59 {offsets = [0, 1, 0], sizes = [8, 1, 128], strides = [1, 1, 1]} : vector<8x8x128xf32> to vector<8x1x128xf32>
    %69 = vector.broadcast %67 : vector<8x8x1xf32> to vector<8x8x128xf32>
    %70 = vector.broadcast %68 : vector<8x1x128xf32> to vector<8x8x128xf32>
    %71 = arith.mulf %69, %70 : vector<8x8x128xf32>
    %72 = arith.addf %66, %71 : vector<8x8x128xf32>
    %73 = vector.extract_strided_slice %4 {offsets = [0, 0, 2], sizes = [8, 8, 1], strides = [1, 1, 1]} : vector<8x8x8xf32> to vector<8x8x1xf32>
    %74 = vector.extract_strided_slice %59 {offsets = [0, 2, 0], sizes = [8, 1, 128], strides = [1, 1, 1]} : vector<8x8x128xf32> to vector<8x1x128xf32>
    %75 = vector.broadcast %73 : vector<8x8x1xf32> to vector<8x8x128xf32>
    %76 = vector.broadcast %74 : vector<8x1x128xf32> to vector<8x8x128xf32>
    %77 = arith.mulf %75, %76 : vector<8x8x128xf32>
    %78 = arith.addf %72, %77 : vector<8x8x128xf32>
    %79 = vector.extract_strided_slice %4 {offsets = [0, 0, 3], sizes = [8, 8, 1], strides = [1, 1, 1]} : vector<8x8x8xf32> to vector<8x8x1xf32>
    %80 = vector.extract_strided_slice %59 {offsets = [0, 3, 0], sizes = [8, 1, 128], strides = [1, 1, 1]} : vector<8x8x128xf32> to vector<8x1x128xf32>
    %81 = vector.broadcast %79 : vector<8x8x1xf32> to vector<8x8x128xf32>
    %82 = vector.broadcast %80 : vector<8x1x128xf32> to vector<8x8x128xf32>
    %83 = arith.mulf %81, %82 : vector<8x8x128xf32>
    %84 = arith.addf %78, %83 : vector<8x8x128xf32>
    %85 = vector.extract_strided_slice %4 {offsets = [0, 0, 4], sizes = [8, 8, 1], strides = [1, 1, 1]} : vector<8x8x8xf32> to vector<8x8x1xf32>
    %86 = vector.extract_strided_slice %59 {offsets = [0, 4, 0], sizes = [8, 1, 128], strides = [1, 1, 1]} : vector<8x8x128xf32> to vector<8x1x128xf32>
    %87 = vector.broadcast %85 : vector<8x8x1xf32> to vector<8x8x128xf32>
    %88 = vector.broadcast %86 : vector<8x1x128xf32> to vector<8x8x128xf32>
    %89 = arith.mulf %87, %88 : vector<8x8x128xf32>
    %90 = arith.addf %84, %89 : vector<8x8x128xf32>
    %91 = vector.extract_strided_slice %4 {offsets = [0, 0, 5], sizes = [8, 8, 1], strides = [1, 1, 1]} : vector<8x8x8xf32> to vector<8x8x1xf32>
    %92 = vector.extract_strided_slice %59 {offsets = [0, 5, 0], sizes = [8, 1, 128], strides = [1, 1, 1]} : vector<8x8x128xf32> to vector<8x1x128xf32>
    %93 = vector.broadcast %91 : vector<8x8x1xf32> to vector<8x8x128xf32>
    %94 = vector.broadcast %92 : vector<8x1x128xf32> to vector<8x8x128xf32>
    %95 = arith.mulf %93, %94 : vector<8x8x128xf32>
    %96 = arith.addf %90, %95 : vector<8x8x128xf32>
    %97 = vector.extract_strided_slice %4 {offsets = [0, 0, 6], sizes = [8, 8, 1], strides = [1, 1, 1]} : vector<8x8x8xf32> to vector<8x8x1xf32>
    %98 = vector.extract_strided_slice %59 {offsets = [0, 6, 0], sizes = [8, 1, 128], strides = [1, 1, 1]} : vector<8x8x128xf32> to vector<8x1x128xf32>
    %99 = vector.broadcast %97 : vector<8x8x1xf32> to vector<8x8x128xf32>
    %100 = vector.broadcast %98 : vector<8x1x128xf32> to vector<8x8x128xf32>
    %101 = arith.mulf %99, %100 : vector<8x8x128xf32>
    %102 = arith.addf %96, %101 : vector<8x8x128xf32>
    %103 = vector.extract_strided_slice %4 {offsets = [0, 0, 7], sizes = [8, 8, 1], strides = [1, 1, 1]} : vector<8x8x8xf32> to vector<8x8x1xf32>
    %104 = vector.extract_strided_slice %59 {offsets = [0, 7, 0], sizes = [8, 1, 128], strides = [1, 1, 1]} : vector<8x8x128xf32> to vector<8x1x128xf32>
    %105 = vector.broadcast %103 : vector<8x8x1xf32> to vector<8x8x128xf32>
    %106 = vector.broadcast %104 : vector<8x1x128xf32> to vector<8x8x128xf32>
    %107 = arith.mulf %105, %106 : vector<8x8x128xf32>
    %108 = arith.addf %102, %107 : vector<8x8x128xf32>
    %109 = vector.shape_cast %108 : vector<8x8x128xf32> to vector<8x1024xf32>
    %c0_11 = arith.constant 0 : index
    %c0_12 = arith.constant 0 : index
    %110 = vector.load %arg5[%c0_11, %c0_12] : memref<1024x128xf32, #tpu.memory_space<vmem>>, vector<1024x128xf32>
    %cst_13 = arith.constant dense<0.000000e+00> : vector<8x128xf32>
    %111 = tpu.matmul %109, %110, %cst_13 {dimension_numbers = #tpu.dot_dimension_numbers<[1], [0], [0], [1], [0, 0, 1, 1], [], []>} : vector<8x1024xf32>, vector<1024x128xf32>, vector<8x128xf32> -> vector<8x128xf32>
    %c0_14 = arith.constant 0 : index
    %c0_15 = arith.constant 0 : index
    %112 = vector.load %arg6[%c0_14, %c0_15] : memref<1x128xf32, #tpu.memory_space<vmem>>, vector<1x128xf32>
    %113 = vector.broadcast %112 : vector<1x128xf32> to vector<8x128xf32>
    %114 = arith.addf %111, %113 : vector<8x128xf32>
    %c0_16 = arith.constant 0 : index
    %c0_17 = arith.constant 0 : index
    %115 = vector.load %arg7[%c0_16, %c0_17] : memref<8x128xf32, #tpu.memory_space<vmem>>, vector<8x128xf32>
    tpu.vector_store %arg7[%c0_16, %c0_17], %114 {strides = array<i32>} : memref<8x128xf32, #tpu.memory_space<vmem>>, vector<8x128xf32>,
    return
  }
  func.func @transform_0(%arg0: i32) -> (i32, i32) {
    %c0_i32 = arith.constant 0 : i32
    %c0_i32_0 = arith.constant 0 : i32
    return %arg0, %c0_i32 : i32, i32
  }
  func.func @transform_1(%arg0: i32) -> (i32, i32, i32) {
    %c0_i32 = arith.constant 0 : i32
    %c0_i32_0 = arith.constant 0 : i32
    %c0_i32_1 = arith.constant 0 : i32
    return %arg0, %c0_i32, %c0_i32_0 : i32, i32, i32
  }
  func.func @transform_2(%arg0: i32) -> (i32, i32) {
    %c0_i32 = arith.constant 0 : i32
    %c0_i32_0 = arith.constant 0 : i32
    %c0_i32_1 = arith.constant 0 : i32
    return %c0_i32, %c0_i32_0 : i32, i32
  }
  func.func @transform_3(%arg0: i32) -> (i32, i32) {
    %c0_i32 = arith.constant 0 : i32
    %c0_i32_0 = arith.constant 0 : i32
    %c0_i32_1 = arith.constant 0 : i32
    return %c0_i32, %c0_i32_0 : i32, i32
  }
  func.func @transform_4(%arg0: i32) -> (i32, i32) {
    %c0_i32 = arith.constant 0 : i32
    %c0_i32_0 = arith.constant 0 : i32
    %c0_i32_1 = arith.constant 0 : i32
    return %c0_i32, %c0_i32_0 : i32, i32
  }
  func.func @transform_5(%arg0: i32) -> (i32, i32) {
    %c0_i32 = arith.constant 0 : i32
    %c0_i32_0 = arith.constant 0 : i32
    %c0_i32_1 = arith.constant 0 : i32
    return %c0_i32, %c0_i32_0 : i32, i32
  }
  func.func @transform_6(%arg0: i32) -> (i32, i32) {
    %c0_i32 = arith.constant 0 : i32
    %c0_i32_0 = arith.constant 0 : i32
    return %arg0, %c0_i32 : i32, i32
  }
}

</mosaic_0001>

<llo_original>
// kernel: tpu_custom_call.1
$region0: #{tpu_custom_call.1}
  #allocation0 [shape = 'u32[]', space=smem, size = 0x4, offset = 0x4, fixed_abs, tag = 'smem constant byte address 0x4 - core index']
  #allocation1 [shape = 'u32[144,128]{1,0:T(1,128)}', space=vmem, size = 0x12000, scoped, tag = 'internal scratch']
  %s0 = inlined_call_operand.vmem [shape: f32[128,128], index: 0, kind: input, shape index: {}]
  %s1 = inlined_call_operand.vmem [shape: f32[16,8,8], index: 1, kind: input, shape index: {}]
  %s2 = inlined_call_operand.hbm [shape: f32[128,128], index: 2, kind: input, shape index: {}]
  %s3 = inlined_call_operand.vmem [shape: f32[1,128], index: 3, kind: input, shape index: {}]
  %s4 = inlined_call_operand.hbm [shape: f32[1024,128], index: 4, kind: input, shape index: {}]
  %s5 = inlined_call_operand.vmem [shape: f32[1,128], index: 5, kind: input, shape index: {}]
  %s6 = inlined_call_operand.hbm [shape: f32[16,128], index: 6, kind: output, shape index: {}]
  %s7 = sld [smem:[#allocation0]]
  $region65: #{tpu_custom_call.1} parent=0
    _
  %s9 = ssub.s32 1, %s7
  %s10 = scalar_select 0, %s9, %s7
  $region1: #{tpu_custom_call.1} parent=0
    #allocation2 [shape = 'u8[65536]{0}', space=vmem, size = 0x10000, scoped, tag = 'input window, operand 2, single buffered']
    #allocation3 [shape = 's32[2]{0}', space=sflag, size = 0x8, scoped, tag = 'scoped memory for tpu_custom_call.1']
    #allocation4 [shape = 's32[2]{0}', space=sflag, size = 0x8, scoped, tag = 'scoped memory for tpu_custom_call.1']
    #allocation5 [shape = 'u8[524288]{0}', space=vmem, size = 0x80000, scoped, tag = 'input window, operand 4, single buffered']
    #allocation6 [shape = 's32[1]{0}', space=sflag, size = 0x4, scoped, tag = 'scoped memory for tpu_custom_call.1']
    #allocation7 [shape = 'u8[8192]{0}', space=vmem, size = 0x2000, scoped, tag = 'output window, operand 0']
    %11 = vsyncpa [#allocation3], 0
    %12 = vsyncpa [#allocation6], 0
    %13 = vsyncpa [#allocation4], 0
    %s14 = scalar_lea.sflag [#allocation4], 1
    %15 = vsyncpa %s14, 0
    loop: start=0, step=1, limit=4
    $region2: #{tpu_custom_call.1} parent=1 // loop_pre_header
      _
    $region3: #{tpu_custom_call.1} parent=1 // loop_header
      %s17 = sphi 0, %s21
      %p18 = scmp.ge.s32.totalorder %s17, 4
      %s27 = sphi 0, %s29
      %s30 = sphi 0, %s27
      %s31 = sphi 0, %s30
      %s47 = sphi 0, %s31
      %s53 = sphi 0, %s55
      %s56 = sphi 0, %s53
      %s57 = sphi 0, %s56
      %s73 = sphi 0, %s57
      %s77 = sphi 0, %s77
      %s79 = sphi 0, %s77
      %s80 = sphi 0, %s79
      %s94 = sphi 0, %s80
      %s98 = sphi 0, %s98
      %s100 = sphi 0, %s98
      %s101 = sphi 0, %s100
      %s115 = sphi 0, %s101
      %s119 = sphi 0, %s119
      %s121 = sphi 0, %s119
      %s122 = sphi 0, %s121
      %s136 = sphi 0, %s122
      %s140 = sphi 0, %s140
      %s142 = sphi 0, %s140
      %s143 = sphi 0, %s142
      %s157 = sphi 0, %s143
      %s163 = sphi 0, %s165
      %s166 = sphi 0, %s163
      %s167 = sphi 0, %s166
      %s183 = sphi 0, %s167
    $region4: #{tpu_custom_call.1} parent=1 // loop_header_branch
      %20 = sbr.rel (%p18) target = $region8
    $region5: #{tpu_custom_call.1} parent=1 // loop_body
      %s22 = ssub.s32 %s17, 1
      %s23 = ssub.s32 %s17, 2
      %s24 = sadd.s32 %s17, 1
      %s25 = ssub.s32 %s17, %s24
      %p26 = scmp.eq.s32.totalorder %s25, 0
      %s28 = sadd.s32 %s27, 1
      %s29 = scalar_select %p26, %s27, %s28
      %p32 = pneg %p26
      %p33 = scmp.eq.s32.totalorder %s17, 1
      %p34 = por %p32, %p33
      %p35 = scmp.ne.s32.totalorder %s27, %s30
      %p36 = scmp.eq.s32.totalorder %s17, 0
      %p37 = por %p35, %p36
      %p38 = scmp.ne.s32.totalorder %s27, %s30
      %p39 = scmp.eq.s32.totalorder %s22, 1
      %p40 = por %p38, %p39
      %p41 = scmp.ne.s32.totalorder %s30, %s31
      %p42 = scmp.eq.s32.totalorder %s22, 0
      %p43 = por %p41, %p42
      %p44 = scmp.ne.s32.totalorder %s30, %s31
      %p45 = scmp.eq.s32.totalorder %s23, 1
      %p46 = por %p44, %p45
      %p48 = scmp.ne.s32.totalorder %s31, %s47
      %p49 = scmp.eq.s32.totalorder %s23, 0
      %p50 = por %p48, %p49
      %s51 = ssub.s32 %s17, %s24
      %p52 = scmp.eq.s32.totalorder %s51, 0
      %s54 = sadd.s32 %s53, 1
      %s55 = scalar_select %p52, %s53, %s54
      %p58 = pneg %p52
      %p59 = scmp.eq.s32.totalorder %s17, 1
      %p60 = por %p58, %p59
      %p61 = scmp.ne.s32.totalorder %s53, %s56
      %p62 = scmp.eq.s32.totalorder %s17, 0
      %p63 = por %p61, %p62
      %p64 = scmp.ne.s32.totalorder %s53, %s56
      %p65 = scmp.eq.s32.totalorder %s22, 1
      %p66 = por %p64, %p65
      %p67 = scmp.ne.s32.totalorder %s56, %s57
      %p68 = scmp.eq.s32.totalorder %s22, 0
      %p69 = por %p67, %p68
      %p70 = scmp.ne.s32.totalorder %s56, %s57
      %p71 = scmp.eq.s32.totalorder %s23, 1
      %p72 = por %p70, %p71
      %p74 = scmp.ne.s32.totalorder %s57, %s73
      %p75 = scmp.eq.s32.totalorder %s23, 0
      %p76 = por %p74, %p75
      %s78 = sadd.s32 %s77, 1
      %p81 = scmp.eq.s32.totalorder %s17, 1
      %p82 = scmp.ne.s32.totalorder %s77, %s79
      %p83 = scmp.eq.s32.totalorder %s17, 0
      %p84 = por %p82, %p83
      %p85 = scmp.ne.s32.totalorder %s77, %s79
      %p86 = scmp.eq.s32.totalorder %s22, 1
      %p87 = por %p85, %p86
      %p88 = scmp.ne.s32.totalorder %s79, %s80
      %p89 = scmp.eq.s32.totalorder %s22, 0
      %p90 = por %p88, %p89
      %p91 = scmp.ne.s32.totalorder %s79, %s80
      %p92 = scmp.eq.s32.totalorder %s23, 1
      %p93 = por %p91, %p92
      %p95 = scmp.ne.s32.totalorder %s80, %s94
      %p96 = scmp.eq.s32.totalorder %s23, 0
      %p97 = por %p95, %p96
      %s99 = sadd.s32 %s98, 1
      %p102 = scmp.eq.s32.totalorder %s17, 1
      %p103 = scmp.ne.s32.totalorder %s98, %s100
      %p104 = scmp.eq.s32.totalorder %s17, 0
      %p105 = por %p103, %p104
      %p106 = scmp.ne.s32.totalorder %s98, %s100
      %p107 = scmp.eq.s32.totalorder %s22, 1
      %p108 = por %p106, %p107
      %p109 = scmp.ne.s32.totalorder %s100, %s101
      %p110 = scmp.eq.s32.totalorder %s22, 0
      %p111 = por %p109, %p110
      %p112 = scmp.ne.s32.totalorder %s100, %s101
      %p113 = scmp.eq.s32.totalorder %s23, 1
      %p114 = por %p112, %p113
      %p116 = scmp.ne.s32.totalorder %s101, %s115
      %p117 = scmp.eq.s32.totalorder %s23, 0
      %p118 = por %p116, %p117
      %s120 = sadd.s32 %s119, 1
      %p123 = scmp.eq.s32.totalorder %s17, 1
      %p124 = scmp.ne.s32.totalorder %s119, %s121
      %p125 = scmp.eq.s32.totalorder %s17, 0
      %p126 = por %p124, %p125
      %p127 = scmp.ne.s32.totalorder %s119, %s121
      %p128 = scmp.eq.s32.totalorder %s22, 1
      %p129 = por %p127, %p128
      %p130 = scmp.ne.s32.totalorder %s121, %s122
      %p131 = scmp.eq.s32.totalorder %s22, 0
      %p132 = por %p130, %p131
      %p133 = scmp.ne.s32.totalorder %s121, %s122
      %p134 = scmp.eq.s32.totalorder %s23, 1
      %p135 = por %p133, %p134
      %p137 = scmp.ne.s32.totalorder %s122, %s136
      %p138 = scmp.eq.s32.totalorder %s23, 0
      %p139 = por %p137, %p138
      %s141 = sadd.s32 %s140, 1
      %p144 = scmp.eq.s32.totalorder %s17, 1
      %p145 = scmp.ne.s32.totalorder %s140, %s142
      %p146 = scmp.eq.s32.totalorder %s17, 0
      %p147 = por %p145, %p146
      %p148 = scmp.ne.s32.totalorder %s140, %s142
      %p149 = scmp.eq.s32.totalorder %s22, 1
      %p150 = por %p148, %p149
      %p151 = scmp.ne.s32.totalorder %s142, %s143
      %p152 = scmp.eq.s32.totalorder %s22, 0
      %p153 = por %p151, %p152
      %p154 = scmp.ne.s32.totalorder %s142, %s143
      %p155 = scmp.eq.s32.totalorder %s23, 1
      %p156 = por %p154, %p155
      %p158 = scmp.ne.s32.totalorder %s143, %s157
      %p159 = scmp.eq.s32.totalorder %s23, 0
      %p160 = por %p158, %p159
      %s161 = ssub.s32 %s17, %s24
      %p162 = scmp.eq.s32.totalorder %s161, 0
      %s164 = sadd.s32 %s163, 1
      %s165 = scalar_select %p162, %s163, %s164
      %p168 = pneg %p162
      %p169 = scmp.eq.s32.totalorder %s17, 1
      %p170 = por %p168, %p169
      %p171 = scmp.ne.s32.totalorder %s163, %s166
      %p172 = scmp.eq.s32.totalorder %s17, 0
      %p173 = por %p171, %p172
      %p174 = scmp.ne.s32.totalorder %s163, %s166
      %p175 = scmp.eq.s32.totalorder %s22, 1
      %p176 = por %p174, %p175
      %p177 = scmp.ne.s32.totalorder %s166, %s167
      %p178 = scmp.eq.s32.totalorder %s22, 0
      %p179 = por %p177, %p178
      %p180 = scmp.ne.s32.totalorder %s166, %s167
      %p181 = scmp.eq.s32.totalorder %s23, 1
      %p182 = por %p180, %p181
      %p184 = scmp.ne.s32.totalorder %s167, %s183
      %p185 = scmp.eq.s32.totalorder %s23, 0
      %p186 = por %p184, %p185
      %p187 = scmp.le.s32.totalorder 1, %s17
      %p188 = scmp.lt.s32.totalorder %s17, 3
      %p189 = pnand %p187, %p188
      %p190 = pneg %p189
      // Predicated region
      $region9: #{tpu_custom_call.1} parent=5 // pred_check
        _
      $region10: #{tpu_custom_call.1} parent=5 // pred_check_branch
        %192 = sbr.rel (%p189) target = $region12
      $region11: #{tpu_custom_call.1} parent=5 // pred_region
        %s193 = ssub.s32 %s17, 1
        // Predicated region
        $region13: #{tpu_custom_call.1} parent=11 // pred_check
          %p194 = pneg %p90
        $region14: #{tpu_custom_call.1} parent=11 // pred_check_branch
          %196 = sbr.rel (%p194) target = $region16
        $region15: #{tpu_custom_call.1} parent=11 // pred_region
          %s198 = ssub.s32 2048, 2048
          %199 = vsyncadd [#allocation3], %s198
          %s200 = sshll.u32 [#allocation2], 4
          %s201 = int_to_ptr.vmem [resolvable:$true] %s200
          %206 = dma.hbm_to_vmem [thread:$0]  %s2, 2048, %s201, [#allocation3], 128, 128, 8
        $region16: #{tpu_custom_call.1} parent=11 // pred_fallthru
          _
        // Predicated region
        $region17: #{tpu_custom_call.1} parent=11 // pred_check
          %p207 = pneg %p111
        $region18: #{tpu_custom_call.1} parent=11 // pred_check_branch
          %209 = sbr.rel (%p207) target = $region20
        $region19: #{tpu_custom_call.1} parent=11 // pred_region
          _
        $region20: #{tpu_custom_call.1} parent=11 // pred_fallthru
          _
        // Predicated region
        $region21: #{tpu_custom_call.1} parent=11 // pred_check
          %p210 = pneg %p132
        $region22: #{tpu_custom_call.1} parent=11 // pred_check_branch
          %212 = sbr.rel (%p210) target = $region24
        $region23: #{tpu_custom_call.1} parent=11 // pred_region
          %s214 = ssub.s32 16384, 16384
          %215 = vsyncadd [#allocation6], %s214
          %s216 = sshll.u32 [#allocation5], 4
          %s217 = int_to_ptr.vmem [resolvable:$true] %s216
          %222 = dma.hbm_to_vmem [thread:$0]  %s4, 16384, %s217, [#allocation6], 128, 128, 8
        $region24: #{tpu_custom_call.1} parent=11 // pred_fallthru
          _
        // Predicated region
        $region25: #{tpu_custom_call.1} parent=11 // pred_check
          %p223 = pneg %p153
        $region26: #{tpu_custom_call.1} parent=11 // pred_check_branch
          %225 = sbr.rel (%p223) target = $region28
        $region27: #{tpu_custom_call.1} parent=11 // pred_region
          _
        $region28: #{tpu_custom_call.1} parent=11 // pred_fallthru
          _
      $region12: #{tpu_custom_call.1} parent=5 // pred_fallthru
        _
      %p226 = scmp.lt.s32.totalorder %s17, 2
      // Predicated region
      $region29: #{tpu_custom_call.1} parent=5 // pred_check
        %p227 = pneg %p226
      $region30: #{tpu_custom_call.1} parent=5 // pred_check_branch
        %229 = sbr.rel (%p227) target = $region32
      $region31: #{tpu_custom_call.1} parent=5 // pred_region
        // Predicated region
        $region33: #{tpu_custom_call.1} parent=31 // pred_check
          %p230 = pneg %p37
        $region34: #{tpu_custom_call.1} parent=31 // pred_check_branch
          %232 = sbr.rel (%p230) target = $region36
        $region35: #{tpu_custom_call.1} parent=31 // pred_region
          %s233 = smul.u32 8, %s17
          %p234 = scmp.lt.s32.totalorder %s233, 15
          %s235 = scalar_select %p234, %s233, 15
          %s236 = smul.addr %s235, 8
          %s237 = scalar_lea.vmem %s0, %s236
          %s238 = smul.u32 8, %s17
        $region36: #{tpu_custom_call.1} parent=31 // pred_fallthru
          _
        // Predicated region
        $region37: #{tpu_custom_call.1} parent=31 // pred_check
          %p239 = pneg %p63
        $region38: #{tpu_custom_call.1} parent=31 // pred_check_branch
          %241 = sbr.rel (%p239) target = $region40
        $region39: #{tpu_custom_call.1} parent=31 // pred_region
          %s242 = smul.u32 8, %s17
          %p243 = scmp.lt.s32.totalorder %s242, 15
          %s244 = scalar_select %p243, %s242, 15
          %s245 = smul.addr %s244, 8
          %s246 = scalar_lea.vmem %s1, %s245
          %s247 = smul.u32 8, %s17
        $region40: #{tpu_custom_call.1} parent=31 // pred_fallthru
          _
      $region32: #{tpu_custom_call.1} parent=5 // pred_fallthru
        _
      %p248 = scmp.le.s32.totalorder 1, %s17
      %p249 = scmp.lt.s32.totalorder %s17, 3
      %p250 = pnand %p248, %p249
      %p251 = pneg %p250
      // Predicated region
      $region41: #{tpu_custom_call.1} parent=5 // pred_check
        _
      $region42: #{tpu_custom_call.1} parent=5 // pred_check_branch
        %253 = sbr.rel (%p250) target = $region44
      $region43: #{tpu_custom_call.1} parent=5 // pred_region
        %s254 = ssub.s32 %s17, 1
        // Predicated region
        $region45: #{tpu_custom_call.1} parent=43 // pred_check
          %p255 = pneg %p90
        $region46: #{tpu_custom_call.1} parent=43 // pred_check_branch
          %257 = sbr.rel (%p255) target = $region48
        $region47: #{tpu_custom_call.1} parent=43 // pred_region
          %258 = dma.done [#allocation3], 2048
        $region48: #{tpu_custom_call.1} parent=43 // pred_fallthru
          _
        // Predicated region
        $region49: #{tpu_custom_call.1} parent=43 // pred_check
          %p259 = pneg %p132
        $region50: #{tpu_custom_call.1} parent=43 // pred_check_branch
          %261 = sbr.rel (%p259) target = $region52
        $region51: #{tpu_custom_call.1} parent=43 // pred_region
          %262 = dma.done [#allocation6], 16384
        $region52: #{tpu_custom_call.1} parent=43 // pred_fallthru
          _
        %s263 = smul.u32 8, %s22
        %p264 = scmp.lt.s32.totalorder %s263, 15
        %s265 = scalar_select %p264, %s263, 15
        %s266 = smul.addr %s265, 8
        %s267 = scalar_lea.vmem %s0, %s266
        %p268 = pneg %p43
        %p269 = pneg %p40
        %s270 = smul.u32 8, %s22
        %p271 = scmp.lt.s32.totalorder %s270, 15
        %s272 = scalar_select %p271, %s270, 15
        %s273 = smul.addr %s272, 8
        %s274 = scalar_lea.vmem %s1, %s273
        %p275 = pneg %p69
        %p276 = pneg %p66
        %p277 = pneg %p90
        %p278 = pneg %p87
        %p279 = pneg %p111
        %p280 = pneg %p108
        %p281 = pneg %p132
        %p282 = pneg %p129
        %p283 = pneg %p153
        %p284 = pneg %p150
        %p285 = pneg %p179
        %p286 = pneg %p176
        %s287 = sand.u32 %s166, 1
        %s288 = scalar_lea.sflag [#allocation4], %s287
        %s289 = sand.u32 %s166, 1
        %s290 = smul.addr %s289, 8
        %s291 = scalar_lea.vmem [#allocation7], %s290
        %s292 = smul.u32 8, %s22
        %p293 = scmp.lt.s32.totalorder %s292, 15
        %s294 = scalar_select %p293, %s292, 15
        %s295 = smul.addr %s294, 8
        %s296 = scalar_lea.vmem %s0, %s295
        %s297 = smul.u32 8, %s22
        %s298 = smul.u32 8, %s22
        %p299 = scmp.lt.s32.totalorder %s298, 15
        %s300 = scalar_select %p299, %s298, 15
        %s301 = smul.addr %s300, 8
        %s302 = scalar_lea.vmem %s1, %s301
        %s303 = smul.u32 8, %s22
        %v304 = vld [vmem:[%s296] sm:$0xff]
        %v305 = vld [vmem:[%s296 + $0x8] sm:$0xff]
        %v306 = vld [vmem:[%s296 + $0x10] sm:$0xff]
        %v307 = vld [vmem:[%s296 + $0x18] sm:$0xff]
        %v308 = vld [vmem:[%s296 + $0x20] sm:$0xff]
        %v309 = vld [vmem:[%s296 + $0x28] sm:$0xff]
        %v310 = vld [vmem:[%s296 + $0x30] sm:$0xff]
        %v311 = vld [vmem:[%s296 + $0x38] sm:$0xff]
        %v312 = vld [vmem:[#allocation2] sm:$0xff]
        %v313 = vld [vmem:[#allocation2 + $0x8] sm:$0xff]
        %v314 = vld [vmem:[#allocation2 + $0x10] sm:$0xff]
        %v315 = vld [vmem:[#allocation2 + $0x18] sm:$0xff]
        %v316 = vld [vmem:[#allocation2 + $0x20] sm:$0xff]
        %v317 = vld [vmem:[#allocation2 + $0x28] sm:$0xff]
        %v318 = vld [vmem:[#allocation2 + $0x30] sm:$0xff]
        %v319 = vld [vmem:[#allocation2 + $0x38] sm:$0xff]
        %v320 = vld [vmem:[#allocation2 + $0x40] sm:$0xff]
        %v321 = vld [vmem:[#allocation2 + $0x48] sm:$0xff]
        %v322 = vld [vmem:[#allocation2 + $0x50] sm:$0xff]
        %v323 = vld [vmem:[#allocation2 + $0x58] sm:$0xff]
        %v324 = vld [vmem:[#allocation2 + $0x60] sm:$0xff]
        %v325 = vld [vmem:[#allocation2 + $0x68] sm:$0xff]
        %v326 = vld [vmem:[#allocation2 + $0x70] sm:$0xff]
        %v327 = vld [vmem:[#allocation2 + $0x78] sm:$0xff]
        %328 = vmatprep.subr.mxu0 0.0
        %329 = vmatpush1.msra.mxu0 %v312
        %330 = vmatprep.subr.mxu0 0.0
        %331 = vmatpush1.msra.mxu0 %v313
        %332 = vmatprep.subr.mxu0 0.0
        %333 = vmatpush1.msra.mxu0 %v314
        %334 = vmatprep.subr.mxu0 0.0
        %335 = vmatpush1.msra.mxu0 %v315
        %336 = vmatprep.subr.mxu0 0.0
        %337 = vmatpush1.msra.mxu0 %v316
        %338 = vmatprep.subr.mxu0 0.0
        %339 = vmatpush1.msra.mxu0 %v317
        %340 = vmatprep.subr.mxu0 0.0
        %341 = vmatpush1.msra.mxu0 %v318
        %342 = vmatprep.subr.mxu0 0.0
        %343 = vmatpush1.msra.mxu0 %v319
        %344 = vmatprep.subr.mxu0 0.0
        %345 = vmatpush1.msra.mxu0 %v320
        %346 = vmatprep.subr.mxu0 0.0
        %347 = vmatpush1.msra.mxu0 %v321
        %348 = vmatprep.subr.mxu0 0.0
        %349 = vmatpush1.msra.mxu0 %v322
        %350 = vmatprep.subr.mxu0 0.0
        %351 = vmatpush1.msra.mxu0 %v323
        %352 = vmatprep.subr.mxu0 0.0
        %353 = vmatpush1.msra.mxu0 %v324
        %354 = vmatprep.subr.mxu0 0.0
        %355 = vmatpush1.msra.mxu0 %v325
        %356 = vmatprep.subr.mxu0 0.0
        %357 = vmatpush1.msra.mxu0 %v326
        %358 = vmatprep.subr.mxu0 0.0
        %359 = vmatpush1.msra.mxu0 %v327
        %360 = vmatprep.subr.mxu0 0.0
        %361 = vmatpush1.msra.mxu0 0.0
        %362 = vmatprep.subr.mxu0 0.0
        %363 = vmatpush1.msra.mxu0 0.0
        %364 = vmatprep.subr.mxu0 0.0
        %365 = vmatpush1.msra.mxu0 0.0
        %366 = vmatprep.subr.mxu0 0.0
        %367 = vmatpush1.msra.mxu0 0.0
        %368 = vmatprep.subr.mxu0 0.0
        %369 = vmatpush1.msra.mxu0 0.0
        %370 = vmatprep.subr.mxu0 0.0
        %371 = vmatpush1.msra.mxu0 0.0
        %372 = vmatprep.subr.mxu0 0.0
        %373 = vmatpush1.msra.mxu0 0.0
        %374 = vmatprep.subr.mxu0 0.0
        %375 = vmatpush1.msra.mxu0 0.0
        %376 = vmatprep.subr.mxu0 0.0
        %377 = vmatpush1.msra.mxu0 0.0
        %378 = vmatprep.subr.mxu0 0.0
        %379 = vmatpush1.msra.mxu0 0.0
        %380 = vmatprep.subr.mxu0 0.0
        %381 = vmatpush1.msra.mxu0 0.0
        %382 = vmatprep.subr.mxu0 0.0
        %383 = vmatpush1.msra.mxu0 0.0
        %384 = vmatprep.subr.mxu0 0.0
        %385 = vmatpush1.msra.mxu0 0.0
        %386 = vmatprep.subr.mxu0 0.0
        %387 = vmatpush1.msra.mxu0 0.0
        %388 = vmatprep.subr.mxu0 0.0
        %389 = vmatpush1.msra.mxu0 0.0
        %390 = vmatprep.subr.mxu0 0.0
        %391 = vmatpush1.msra.mxu0 0.0
        %392 = vmatprep.mubr.f32.mxu0 0.0
        %393 = vmatmul.mubr.f32.gmra.mrb[0].mxu0 %v304
        %v394 = vpop.f32.mrb[0].mxu0
        %v395 = vadd.f32 0.0, %v394
        %v396 = vpop.f32.mrb[0].mxu0
        %397 = vmatprep.mubr.f32.mxu0 0.0
        %398 = vmatmul.mubr.f32.gmra.mrb[0].mxu0 %v305
        %v399 = vpop.f32.mrb[0].mxu0
        %v400 = vadd.f32 0.0, %v399
        %v401 = vpop.f32.mrb[0].mxu0
        %402 = vmatprep.mubr.f32.mxu0 0.0
        %403 = vmatmul.mubr.f32.gmra.mrb[0].mxu0 %v306
        %v404 = vpop.f32.mrb[0].mxu0
        %v405 = vadd.f32 0.0, %v404
        %v406 = vpop.f32.mrb[0].mxu0
        %407 = vmatprep.mubr.f32.mxu0 0.0
        %408 = vmatmul.mubr.f32.gmra.mrb[0].mxu0 %v307
        %v409 = vpop.f32.mrb[0].mxu0
        %v410 = vadd.f32 0.0, %v409
        %v411 = vpop.f32.mrb[0].mxu0
        %412 = vmatprep.mubr.f32.mxu0 0.0
        %413 = vmatmul.mubr.f32.gmra.mrb[0].mxu0 %v308
        %v414 = vpop.f32.mrb[0].mxu0
        %v415 = vadd.f32 0.0, %v414
        %v416 = vpop.f32.mrb[0].mxu0
        %417 = vmatprep.mubr.f32.mxu0 0.0
        %418 = vmatmul.mubr.f32.gmra.mrb[0].mxu0 %v309
        %v419 = vpop.f32.mrb[0].mxu0
        %v420 = vadd.f32 0.0, %v419
        %v421 = vpop.f32.mrb[0].mxu0
        %422 = vmatprep.mubr.f32.mxu0 0.0
        %423 = vmatmul.mubr.f32.gmra.mrb[0].mxu0 %v310
        %v424 = vpop.f32.mrb[0].mxu0
        %v425 = vadd.f32 0.0, %v424
        %v426 = vpop.f32.mrb[0].mxu0
        %427 = vmatprep.mubr.f32.mxu0 0.0
        %428 = vmatmul.mubr.f32.gmra.mrb[0].mxu0 %v311
        %v429 = vpop.f32.mrb[0].mxu0
        %v430 = vadd.f32 0.0, %v429
        %v431 = vpop.f32.mrb[0].mxu0
        %432 = vdwg.mxu0
        %v433 = vld [vmem:[%s302] sm:$0xff]
        %v434 = vld [vmem:[%s302 + $0x8] sm:$0xff]
        %v435 = vld [vmem:[%s302 + $0x10] sm:$0xff]
        %v436 = vld [vmem:[%s302 + $0x18] sm:$0xff]
        %v437 = vld [vmem:[%s302 + $0x20] sm:$0xff]
        %v438 = vld [vmem:[%s302 + $0x28] sm:$0xff]
        %v439 = vld [vmem:[%s302 + $0x30] sm:$0xff]
        %v440 = vld [vmem:[%s302 + $0x38] sm:$0xff]
        %442 = vset.pattern.permute.xlu0 0
        %443 = vperm.xlu0 %442, %v433
        %v444 = vpop.permute.xlu0 %443
        %447 = vset.pattern.permute.xlu0 0
        %448 = vperm.xlu0 %447, %v434
        %v449 = vpop.permute.xlu0 %448
        %452 = vset.pattern.permute.xlu0 0
        %453 = vperm.xlu0 %452, %v435
        %v454 = vpop.permute.xlu0 %453
        %457 = vset.pattern.permute.xlu0 0
        %458 = vperm.xlu0 %457, %v436
        %v459 = vpop.permute.xlu0 %458
        %462 = vset.pattern.permute.xlu0 0
        %463 = vperm.xlu0 %462, %v437
        %v464 = vpop.permute.xlu0 %463
        %467 = vset.pattern.permute.xlu0 0
        %468 = vperm.xlu0 %467, %v438
        %v469 = vpop.permute.xlu0 %468
        %472 = vset.pattern.permute.xlu0 0
        %473 = vperm.xlu0 %472, %v439
        %v474 = vpop.permute.xlu0 %473
        %477 = vset.pattern.permute.xlu0 0
        %478 = vperm.xlu0 %477, %v440
        %v479 = vpop.permute.xlu0 %478
        %v481 = vlaneseq
        %v482 = vshrl.u32 %v481, 7
        %v483 = vsub.s32 0, %v482
        %v484 = vrot.slane %v395, %v483
        %v485 = vlaneseq
        %v486 = vshrl.u32 %v485, 7
        %v487 = vsub.s32 0, %v486
        %v488 = vrot.slane %v400, %v487
        %v489 = vlaneseq
        %v490 = vshrl.u32 %v489, 7
        %v491 = vsub.s32 0, %v490
        %v492 = vrot.slane %v405, %v491
        %v493 = vlaneseq
        %v494 = vshrl.u32 %v493, 7
        %v495 = vsub.s32 0, %v494
        %v496 = vrot.slane %v410, %v495
        %v497 = vlaneseq
        %v498 = vshrl.u32 %v497, 7
        %v499 = vsub.s32 0, %v498
        %v500 = vrot.slane %v415, %v499
        %v501 = vlaneseq
        %v502 = vshrl.u32 %v501, 7
        %v503 = vsub.s32 0, %v502
        %v504 = vrot.slane %v420, %v503
        %v505 = vlaneseq
        %v506 = vshrl.u32 %v505, 7
        %v507 = vsub.s32 0, %v506
        %v508 = vrot.slane %v425, %v507
        %v509 = vlaneseq
        %v510 = vshrl.u32 %v509, 7
        %v511 = vsub.s32 0, %v510
        %v512 = vrot.slane %v430, %v511
        %v513 = vmul.f32 %v444, %v484
        %v514 = vmul.f32 %v449, %v488
        %v515 = vmul.f32 %v454, %v492
        %v516 = vmul.f32 %v459, %v496
        %v517 = vmul.f32 %v464, %v500
        %v518 = vmul.f32 %v469, %v504
        %v519 = vmul.f32 %v474, %v508
        %v520 = vmul.f32 %v479, %v512
        %v521 = vadd.f32 %v513, 0.0
        %v522 = vadd.f32 %v514, 0.0
        %v523 = vadd.f32 %v515, 0.0
        %v524 = vadd.f32 %v516, 0.0
        %v525 = vadd.f32 %v517, 0.0
        %v526 = vadd.f32 %v518, 0.0
        %v527 = vadd.f32 %v519, 0.0
        %v528 = vadd.f32 %v520, 0.0
        %529 = vset.pattern.permute.xlu0 1
        %530 = vperm.xlu0 %529, %v433
        %v531 = vpop.permute.xlu0 %530
        %533 = vset.pattern.permute.xlu0 1
        %534 = vperm.xlu0 %533, %v434
        %v535 = vpop.permute.xlu0 %534
        %537 = vset.pattern.permute.xlu0 1
        %538 = vperm.xlu0 %537, %v435
        %v539 = vpop.permute.xlu0 %538
        %541 = vset.pattern.permute.xlu0 1
        %542 = vperm.xlu0 %541, %v436
        %v543 = vpop.permute.xlu0 %542
        %545 = vset.pattern.permute.xlu0 1
        %546 = vperm.xlu0 %545, %v437
        %v547 = vpop.permute.xlu0 %546
        %549 = vset.pattern.permute.xlu0 1
        %550 = vperm.xlu0 %549, %v438
        %v551 = vpop.permute.xlu0 %550
        %553 = vset.pattern.permute.xlu0 1
        %554 = vperm.xlu0 %553, %v439
        %v555 = vpop.permute.xlu0 %554
        %557 = vset.pattern.permute.xlu0 1
        %558 = vperm.xlu0 %557, %v440
        %v559 = vpop.permute.xlu0 %558
        %v561 = vlaneseq
        %v562 = vshrl.u32 %v561, 7
        %v563 = vsub.s32 1, %v562
        %v564 = vrot.slane %v395, %v563
        %v565 = vlaneseq
        %v566 = vshrl.u32 %v565, 7
        %v567 = vsub.s32 1, %v566
        %v568 = vrot.slane %v400, %v567
        %v569 = vlaneseq
        %v570 = vshrl.u32 %v569, 7
        %v571 = vsub.s32 1, %v570
        %v572 = vrot.slane %v405, %v571
        %v573 = vlaneseq
        %v574 = vshrl.u32 %v573, 7
        %v575 = vsub.s32 1, %v574
        %v576 = vrot.slane %v410, %v575
        %v577 = vlaneseq
        %v578 = vshrl.u32 %v577, 7
        %v579 = vsub.s32 1, %v578
        %v580 = vrot.slane %v415, %v579
        %v581 = vlaneseq
        %v582 = vshrl.u32 %v581, 7
        %v583 = vsub.s32 1, %v582
        %v584 = vrot.slane %v420, %v583
        %v585 = vlaneseq
        %v586 = vshrl.u32 %v585, 7
        %v587 = vsub.s32 1, %v586
        %v588 = vrot.slane %v425, %v587
        %v589 = vlaneseq
        %v590 = vshrl.u32 %v589, 7
        %v591 = vsub.s32 1, %v590
        %v592 = vrot.slane %v430, %v591
        %v593 = vmul.f32 %v531, %v564
        %v594 = vmul.f32 %v535, %v568
        %v595 = vmul.f32 %v539, %v572
        %v596 = vmul.f32 %v543, %v576
        %v597 = vmul.f32 %v547, %v580
        %v598 = vmul.f32 %v551, %v584
        %v599 = vmul.f32 %v555, %v588
        %v600 = vmul.f32 %v559, %v592
        %v601 = vadd.f32 %v521, %v593
        %v602 = vadd.f32 %v522, %v594
        %v603 = vadd.f32 %v523, %v595
        %v604 = vadd.f32 %v524, %v596
        %v605 = vadd.f32 %v525, %v597
        %v606 = vadd.f32 %v526, %v598
        %v607 = vadd.f32 %v527, %v599
        %v608 = vadd.f32 %v528, %v600
        %609 = vset.pattern.permute.xlu0 2
        %610 = vperm.xlu0 %609, %v433
        %v611 = vpop.permute.xlu0 %610
        %613 = vset.pattern.permute.xlu0 2
        %614 = vperm.xlu0 %613, %v434
        %v615 = vpop.permute.xlu0 %614
        %617 = vset.pattern.permute.xlu0 2
        %618 = vperm.xlu0 %617, %v435
        %v619 = vpop.permute.xlu0 %618
        %621 = vset.pattern.permute.xlu0 2
        %622 = vperm.xlu0 %621, %v436
        %v623 = vpop.permute.xlu0 %622
        %625 = vset.pattern.permute.xlu0 2
        %626 = vperm.xlu0 %625, %v437
        %v627 = vpop.permute.xlu0 %626
        %629 = vset.pattern.permute.xlu0 2
        %630 = vperm.xlu0 %629, %v438
        %v631 = vpop.permute.xlu0 %630
        %633 = vset.pattern.permute.xlu0 2
        %634 = vperm.xlu0 %633, %v439
        %v635 = vpop.permute.xlu0 %634
        %637 = vset.pattern.permute.xlu0 2
        %638 = vperm.xlu0 %637, %v440
        %v639 = vpop.permute.xlu0 %638
        %v641 = vlaneseq
        %v642 = vshrl.u32 %v641, 7
        %v643 = vsub.s32 2, %v642
        %v644 = vrot.slane %v395, %v643
        %v645 = vlaneseq
        %v646 = vshrl.u32 %v645, 7
        %v647 = vsub.s32 2, %v646
        %v648 = vrot.slane %v400, %v647
        %v649 = vlaneseq
        %v650 = vshrl.u32 %v649, 7
        %v651 = vsub.s32 2, %v650
        %v652 = vrot.slane %v405, %v651
        %v653 = vlaneseq
        %v654 = vshrl.u32 %v653, 7
        %v655 = vsub.s32 2, %v654
        %v656 = vrot.slane %v410, %v655
        %v657 = vlaneseq
        %v658 = vshrl.u32 %v657, 7
        %v659 = vsub.s32 2, %v658
        %v660 = vrot.slane %v415, %v659
        %v661 = vlaneseq
        %v662 = vshrl.u32 %v661, 7
        %v663 = vsub.s32 2, %v662
        %v664 = vrot.slane %v420, %v663
        %v665 = vlaneseq
        %v666 = vshrl.u32 %v665, 7
        %v667 = vsub.s32 2, %v666
        %v668 = vrot.slane %v425, %v667
        %v669 = vlaneseq
        %v670 = vshrl.u32 %v669, 7
        %v671 = vsub.s32 2, %v670
        %v672 = vrot.slane %v430, %v671
        %v673 = vmul.f32 %v611, %v644
        %v674 = vmul.f32 %v615, %v648
        %v675 = vmul.f32 %v619, %v652
        %v676 = vmul.f32 %v623, %v656
        %v677 = vmul.f32 %v627, %v660
        %v678 = vmul.f32 %v631, %v664
        %v679 = vmul.f32 %v635, %v668
        %v680 = vmul.f32 %v639, %v672
        %v681 = vadd.f32 %v601, %v673
        %v682 = vadd.f32 %v602, %v674
        %v683 = vadd.f32 %v603, %v675
        %v684 = vadd.f32 %v604, %v676
        %v685 = vadd.f32 %v605, %v677
        %v686 = vadd.f32 %v606, %v678
        %v687 = vadd.f32 %v607, %v679
        %v688 = vadd.f32 %v608, %v680
        %689 = vset.pattern.permute.xlu0 3
        %690 = vperm.xlu0 %689, %v433
        %v691 = vpop.permute.xlu0 %690
        %693 = vset.pattern.permute.xlu0 3
        %694 = vperm.xlu0 %693, %v434
        %v695 = vpop.permute.xlu0 %694
        %697 = vset.pattern.permute.xlu0 3
        %698 = vperm.xlu0 %697, %v435
        %v699 = vpop.permute.xlu0 %698
        %701 = vset.pattern.permute.xlu0 3
        %702 = vperm.xlu0 %701, %v436
        %v703 = vpop.permute.xlu0 %702
        %705 = vset.pattern.permute.xlu0 3
        %706 = vperm.xlu0 %705, %v437
        %v707 = vpop.permute.xlu0 %706
        %709 = vset.pattern.permute.xlu0 3
        %710 = vperm.xlu0 %709, %v438
        %v711 = vpop.permute.xlu0 %710
        %713 = vset.pattern.permute.xlu0 3
        %714 = vperm.xlu0 %713, %v439
        %v715 = vpop.permute.xlu0 %714
        %717 = vset.pattern.permute.xlu0 3
        %718 = vperm.xlu0 %717, %v440
        %v719 = vpop.permute.xlu0 %718
        %v721 = vlaneseq
        %v722 = vshrl.u32 %v721, 7
        %v723 = vsub.s32 3, %v722
        %v724 = vrot.slane %v395, %v723
        %v725 = vlaneseq
        %v726 = vshrl.u32 %v725, 7
        %v727 = vsub.s32 3, %v726
        %v728 = vrot.slane %v400, %v727
        %v729 = vlaneseq
        %v730 = vshrl.u32 %v729, 7
        %v731 = vsub.s32 3, %v730
        %v732 = vrot.slane %v405, %v731
        %v733 = vlaneseq
        %v734 = vshrl.u32 %v733, 7
        %v735 = vsub.s32 3, %v734
        %v736 = vrot.slane %v410, %v735
        %v737 = vlaneseq
        %v738 = vshrl.u32 %v737, 7
        %v739 = vsub.s32 3, %v738
        %v740 = vrot.slane %v415, %v739
        %v741 = vlaneseq
        %v742 = vshrl.u32 %v741, 7
        %v743 = vsub.s32 3, %v742
        %v744 = vrot.slane %v420, %v743
        %v745 = vlaneseq
        %v746 = vshrl.u32 %v745, 7
        %v747 = vsub.s32 3, %v746
        %v748 = vrot.slane %v425, %v747
        %v749 = vlaneseq
        %v750 = vshrl.u32 %v749, 7
        %v751 = vsub.s32 3, %v750
        %v752 = vrot.slane %v430, %v751
        %v753 = vmul.f32 %v691, %v724
        %v754 = vmul.f32 %v695, %v728
        %v755 = vmul.f32 %v699, %v732
        %v756 = vmul.f32 %v703, %v736
        %v757 = vmul.f32 %v707, %v740
        %v758 = vmul.f32 %v711, %v744
        %v759 = vmul.f32 %v715, %v748
        %v760 = vmul.f32 %v719, %v752
        %v761 = vadd.f32 %v681, %v753
        %v762 = vadd.f32 %v682, %v754
        %v763 = vadd.f32 %v683, %v755
        %v764 = vadd.f32 %v684, %v756
        %v765 = vadd.f32 %v685, %v757
        %v766 = vadd.f32 %v686, %v758
        %v767 = vadd.f32 %v687, %v759
        %v768 = vadd.f32 %v688, %v760
        %769 = vset.pattern.permute.xlu0 4
        %770 = vperm.xlu0 %769, %v433
        %v771 = vpop.permute.xlu0 %770
        %773 = vset.pattern.permute.xlu0 4
        %774 = vperm.xlu0 %773, %v434
        %v775 = vpop.permute.xlu0 %774
        %777 = vset.pattern.permute.xlu0 4
        %778 = vperm.xlu0 %777, %v435
        %v779 = vpop.permute.xlu0 %778
        %781 = vset.pattern.permute.xlu0 4
        %782 = vperm.xlu0 %781, %v436
        %v783 = vpop.permute.xlu0 %782
        %785 = vset.pattern.permute.xlu0 4
        %786 = vperm.xlu0 %785, %v437
        %v787 = vpop.permute.xlu0 %786
        %789 = vset.pattern.permute.xlu0 4
        %790 = vperm.xlu0 %789, %v438
        %v791 = vpop.permute.xlu0 %790
        %793 = vset.pattern.permute.xlu0 4
        %794 = vperm.xlu0 %793, %v439
        %v795 = vpop.permute.xlu0 %794
        %797 = vset.pattern.permute.xlu0 4
        %798 = vperm.xlu0 %797, %v440
        %v799 = vpop.permute.xlu0 %798
        %v801 = vlaneseq
        %v802 = vshrl.u32 %v801, 7
        %v803 = vsub.s32 4, %v802
        %v804 = vrot.slane %v395, %v803
        %v805 = vlaneseq
        %v806 = vshrl.u32 %v805, 7
        %v807 = vsub.s32 4, %v806
        %v808 = vrot.slane %v400, %v807
        %v809 = vlaneseq
        %v810 = vshrl.u32 %v809, 7
        %v811 = vsub.s32 4, %v810
        %v812 = vrot.slane %v405, %v811
        %v813 = vlaneseq
        %v814 = vshrl.u32 %v813, 7
        %v815 = vsub.s32 4, %v814
        %v816 = vrot.slane %v410, %v815
        %v817 = vlaneseq
        %v818 = vshrl.u32 %v817, 7
        %v819 = vsub.s32 4, %v818
        %v820 = vrot.slane %v415, %v819
        %v821 = vlaneseq
        %v822 = vshrl.u32 %v821, 7
        %v823 = vsub.s32 4, %v822
        %v824 = vrot.slane %v420, %v823
        %v825 = vlaneseq
        %v826 = vshrl.u32 %v825, 7
        %v827 = vsub.s32 4, %v826
        %v828 = vrot.slane %v425, %v827
        %v829 = vlaneseq
        %v830 = vshrl.u32 %v829, 7
        %v831 = vsub.s32 4, %v830
        %v832 = vrot.slane %v430, %v831
        %v833 = vmul.f32 %v771, %v804
        %v834 = vmul.f32 %v775, %v808
        %v835 = vmul.f32 %v779, %v812
        %v836 = vmul.f32 %v783, %v816
        %v837 = vmul.f32 %v787, %v820
        %v838 = vmul.f32 %v791, %v824
        %v839 = vmul.f32 %v795, %v828
        %v840 = vmul.f32 %v799, %v832
        %v841 = vadd.f32 %v761, %v833
        %v842 = vadd.f32 %v762, %v834
        %v843 = vadd.f32 %v763, %v835
        %v844 = vadd.f32 %v764, %v836
        %v845 = vadd.f32 %v765, %v837
        %v846 = vadd.f32 %v766, %v838
        %v847 = vadd.f32 %v767, %v839
        %v848 = vadd.f32 %v768, %v840
        %849 = vset.pattern.permute.xlu0 5
        %850 = vperm.xlu0 %849, %v433
        %v851 = vpop.permute.xlu0 %850
        %853 = vset.pattern.permute.xlu0 5
        %854 = vperm.xlu0 %853, %v434
        %v855 = vpop.permute.xlu0 %854
        %857 = vset.pattern.permute.xlu0 5
        %858 = vperm.xlu0 %857, %v435
        %v859 = vpop.permute.xlu0 %858
        %861 = vset.pattern.permute.xlu0 5
        %862 = vperm.xlu0 %861, %v436
        %v863 = vpop.permute.xlu0 %862
        %865 = vset.pattern.permute.xlu0 5
        %866 = vperm.xlu0 %865, %v437
        %v867 = vpop.permute.xlu0 %866
        %869 = vset.pattern.permute.xlu0 5
        %870 = vperm.xlu0 %869, %v438
        %v871 = vpop.permute.xlu0 %870
        %873 = vset.pattern.permute.xlu0 5
        %874 = vperm.xlu0 %873, %v439
        %v875 = vpop.permute.xlu0 %874
        %877 = vset.pattern.permute.xlu0 5
        %878 = vperm.xlu0 %877, %v440
        %v879 = vpop.permute.xlu0 %878
        %v881 = vlaneseq
        %v882 = vshrl.u32 %v881, 7
        %v883 = vsub.s32 5, %v882
        %v884 = vrot.slane %v395, %v883
        %v885 = vlaneseq
        %v886 = vshrl.u32 %v885, 7
        %v887 = vsub.s32 5, %v886
        %v888 = vrot.slane %v400, %v887
        %v889 = vlaneseq
        %v890 = vshrl.u32 %v889, 7
        %v891 = vsub.s32 5, %v890
        %v892 = vrot.slane %v405, %v891
        %v893 = vlaneseq
        %v894 = vshrl.u32 %v893, 7
        %v895 = vsub.s32 5, %v894
        %v896 = vrot.slane %v410, %v895
        %v897 = vlaneseq
        %v898 = vshrl.u32 %v897, 7
        %v899 = vsub.s32 5, %v898
        %v900 = vrot.slane %v415, %v899
        %v901 = vlaneseq
        %v902 = vshrl.u32 %v901, 7
        %v903 = vsub.s32 5, %v902
        %v904 = vrot.slane %v420, %v903
        %v905 = vlaneseq
        %v906 = vshrl.u32 %v905, 7
        %v907 = vsub.s32 5, %v906
        %v908 = vrot.slane %v425, %v907
        %v909 = vlaneseq
        %v910 = vshrl.u32 %v909, 7
        %v911 = vsub.s32 5, %v910
        %v912 = vrot.slane %v430, %v911
        %v913 = vmul.f32 %v851, %v884
        %v914 = vmul.f32 %v855, %v888
        %v915 = vmul.f32 %v859, %v892
        %v916 = vmul.f32 %v863, %v896
        %v917 = vmul.f32 %v867, %v900
        %v918 = vmul.f32 %v871, %v904
        %v919 = vmul.f32 %v875, %v908
        %v920 = vmul.f32 %v879, %v912
        %v921 = vadd.f32 %v841, %v913
        %v922 = vadd.f32 %v842, %v914
        %v923 = vadd.f32 %v843, %v915
        %v924 = vadd.f32 %v844, %v916
        %v925 = vadd.f32 %v845, %v917
        %v926 = vadd.f32 %v846, %v918
        %v927 = vadd.f32 %v847, %v919
        %v928 = vadd.f32 %v848, %v920
        %929 = vset.pattern.permute.xlu0 6
        %930 = vperm.xlu0 %929, %v433
        %v931 = vpop.permute.xlu0 %930
        %933 = vset.pattern.permute.xlu0 6
        %934 = vperm.xlu0 %933, %v434
        %v935 = vpop.permute.xlu0 %934
        %937 = vset.pattern.permute.xlu0 6
        %938 = vperm.xlu0 %937, %v435
        %v939 = vpop.permute.xlu0 %938
        %941 = vset.pattern.permute.xlu0 6
        %942 = vperm.xlu0 %941, %v436
        %v943 = vpop.permute.xlu0 %942
        %945 = vset.pattern.permute.xlu0 6
        %946 = vperm.xlu0 %945, %v437
        %v947 = vpop.permute.xlu0 %946
        %949 = vset.pattern.permute.xlu0 6
        %950 = vperm.xlu0 %949, %v438
        %v951 = vpop.permute.xlu0 %950
        %953 = vset.pattern.permute.xlu0 6
        %954 = vperm.xlu0 %953, %v439
        %v955 = vpop.permute.xlu0 %954
        %957 = vset.pattern.permute.xlu0 6
        %958 = vperm.xlu0 %957, %v440
        %v959 = vpop.permute.xlu0 %958
        %v961 = vlaneseq
        %v962 = vshrl.u32 %v961, 7
        %v963 = vsub.s32 6, %v962
        %v964 = vrot.slane %v395, %v963
        %v965 = vlaneseq
        %v966 = vshrl.u32 %v965, 7
        %v967 = vsub.s32 6, %v966
        %v968 = vrot.slane %v400, %v967
        %v969 = vlaneseq
        %v970 = vshrl.u32 %v969, 7
        %v971 = vsub.s32 6, %v970
        %v972 = vrot.slane %v405, %v971
        %v973 = vlaneseq
        %v974 = vshrl.u32 %v973, 7
        %v975 = vsub.s32 6, %v974
        %v976 = vrot.slane %v410, %v975
        %v977 = vlaneseq
        %v978 = vshrl.u32 %v977, 7
        %v979 = vsub.s32 6, %v978
        %v980 = vrot.slane %v415, %v979
        %v981 = vlaneseq
        %v982 = vshrl.u32 %v981, 7
        %v983 = vsub.s32 6, %v982
        %v984 = vrot.slane %v420, %v983
        %v985 = vlaneseq
        %v986 = vshrl.u32 %v985, 7
        %v987 = vsub.s32 6, %v986
        %v988 = vrot.slane %v425, %v987
        %v989 = vlaneseq
        %v990 = vshrl.u32 %v989, 7
        %v991 = vsub.s32 6, %v990
        %v992 = vrot.slane %v430, %v991
        %v993 = vmul.f32 %v931, %v964
        %v994 = vmul.f32 %v935, %v968
        %v995 = vmul.f32 %v939, %v972
        %v996 = vmul.f32 %v943, %v976
        %v997 = vmul.f32 %v947, %v980
        %v998 = vmul.f32 %v951, %v984
        %v999 = vmul.f32 %v955, %v988
        %v1000 = vmul.f32 %v959, %v992
        %v1001 = vadd.f32 %v921, %v993
        %v1002 = vadd.f32 %v922, %v994
        %v1003 = vadd.f32 %v923, %v995
        %v1004 = vadd.f32 %v924, %v996
        %v1005 = vadd.f32 %v925, %v997
        %v1006 = vadd.f32 %v926, %v998
        %v1007 = vadd.f32 %v927, %v999
        %v1008 = vadd.f32 %v928, %v1000
        %1009 = vset.pattern.permute.xlu0 7
        %1010 = vperm.xlu0 %1009, %v433
        %v1011 = vpop.permute.xlu0 %1010
        %1013 = vset.pattern.permute.xlu0 7
        %1014 = vperm.xlu0 %1013, %v434
        %v1015 = vpop.permute.xlu0 %1014
        %1017 = vset.pattern.permute.xlu0 7
        %1018 = vperm.xlu0 %1017, %v435
        %v1019 = vpop.permute.xlu0 %1018
        %1021 = vset.pattern.permute.xlu0 7
        %1022 = vperm.xlu0 %1021, %v436
        %v1023 = vpop.permute.xlu0 %1022
        %1025 = vset.pattern.permute.xlu0 7
        %1026 = vperm.xlu0 %1025, %v437
        %v1027 = vpop.permute.xlu0 %1026
        %1029 = vset.pattern.permute.xlu0 7
        %1030 = vperm.xlu0 %1029, %v438
        %v1031 = vpop.permute.xlu0 %1030
        %1033 = vset.pattern.permute.xlu0 7
        %1034 = vperm.xlu0 %1033, %v439
        %v1035 = vpop.permute.xlu0 %1034
        %1037 = vset.pattern.permute.xlu0 7
        %1038 = vperm.xlu0 %1037, %v440
        %v1039 = vpop.permute.xlu0 %1038
        %v1041 = vlaneseq
        %v1042 = vshrl.u32 %v1041, 7
        %v1043 = vsub.s32 7, %v1042
        %v1044 = vrot.slane %v395, %v1043
        %v1045 = vlaneseq
        %v1046 = vshrl.u32 %v1045, 7
        %v1047 = vsub.s32 7, %v1046
        %v1048 = vrot.slane %v400, %v1047
        %v1049 = vlaneseq
        %v1050 = vshrl.u32 %v1049, 7
        %v1051 = vsub.s32 7, %v1050
        %v1052 = vrot.slane %v405, %v1051
        %v1053 = vlaneseq
        %v1054 = vshrl.u32 %v1053, 7
        %v1055 = vsub.s32 7, %v1054
        %v1056 = vrot.slane %v410, %v1055
        %v1057 = vlaneseq
        %v1058 = vshrl.u32 %v1057, 7
        %v1059 = vsub.s32 7, %v1058
        %v1060 = vrot.slane %v415, %v1059
        %v1061 = vlaneseq
        %v1062 = vshrl.u32 %v1061, 7
        %v1063 = vsub.s32 7, %v1062
        %v1064 = vrot.slane %v420, %v1063
        %v1065 = vlaneseq
        %v1066 = vshrl.u32 %v1065, 7
        %v1067 = vsub.s32 7, %v1066
        %v1068 = vrot.slane %v425, %v1067
        %v1069 = vlaneseq
        %v1070 = vshrl.u32 %v1069, 7
        %v1071 = vsub.s32 7, %v1070
        %v1072 = vrot.slane %v430, %v1071
        %v1073 = vmul.f32 %v1011, %v1044
        %v1074 = vmul.f32 %v1015, %v1048
        %v1075 = vmul.f32 %v1019, %v1052
        %v1076 = vmul.f32 %v1023, %v1056
        %v1077 = vmul.f32 %v1027, %v1060
        %v1078 = vmul.f32 %v1031, %v1064
        %v1079 = vmul.f32 %v1035, %v1068
        %v1080 = vmul.f32 %v1039, %v1072
        %v1081 = vadd.f32 %v1001, %v1073
        %v1082 = vadd.f32 %v1002, %v1074
        %v1083 = vadd.f32 %v1003, %v1075
        %v1084 = vadd.f32 %v1004, %v1076
        %v1085 = vadd.f32 %v1005, %v1077
        %v1086 = vadd.f32 %v1006, %v1078
        %v1087 = vadd.f32 %v1007, %v1079
        %v1088 = vadd.f32 %v1008, %v1080
        %v1089 = vld [vmem:[%s3] sm:$0x1]
        %v1091 = vlaneseq
        %v1092 = vshrl.u32 %v1091, 7
        %v1093 = vsub.s32 0, %v1092
        %v1094 = vrot.slane %v1089, %v1093
        %v1096 = vadd.f32 %v1081, %v1094
        %v1097 = vadd.f32 %v1082, %v1094
        %v1098 = vadd.f32 %v1083, %v1094
        %v1099 = vadd.f32 %v1084, %v1094
        %v1100 = vadd.f32 %v1085, %v1094
        %v1101 = vadd.f32 %v1086, %v1094
        %v1102 = vadd.f32 %v1087, %v1094
        %v1103 = vadd.f32 %v1088, %v1094
        %v1104 = vmax.f32 %v1096, 0.0
        %v1105 = vmax.f32 %v1097, 0.0
        %v1106 = vmax.f32 %v1098, 0.0
        %v1107 = vmax.f32 %v1099, 0.0
        %v1108 = vmax.f32 %v1100, 0.0
        %v1109 = vmax.f32 %v1101, 0.0
        %v1110 = vmax.f32 %v1102, 0.0
        %v1111 = vmax.f32 %v1103, 0.0
        %v1112 = vlaneseq
        %v1113 = vshrl.u32 %v1112, 7
        %v1114 = vsub.s32 0, %v1113
        %v1115 = vrot.slane %v1104, %v1114
        %v1116 = vlaneseq
        %v1117 = vshrl.u32 %v1116, 7
        %v1118 = vsub.s32 0, %v1117
        %v1119 = vrot.slane %v1105, %v1118
        %v1120 = vlaneseq
        %v1121 = vshrl.u32 %v1120, 7
        %v1122 = vsub.s32 0, %v1121
        %v1123 = vrot.slane %v1106, %v1122
        %v1124 = vlaneseq
        %v1125 = vshrl.u32 %v1124, 7
        %v1126 = vsub.s32 0, %v1125
        %v1127 = vrot.slane %v1107, %v1126
        %v1128 = vlaneseq
        %v1129 = vshrl.u32 %v1128, 7
        %v1130 = vsub.s32 0, %v1129
        %v1131 = vrot.slane %v1108, %v1130
        %v1132 = vlaneseq
        %v1133 = vshrl.u32 %v1132, 7
        %v1134 = vsub.s32 0, %v1133
        %v1135 = vrot.slane %v1109, %v1134
        %v1136 = vlaneseq
        %v1137 = vshrl.u32 %v1136, 7
        %v1138 = vsub.s32 0, %v1137
        %v1139 = vrot.slane %v1110, %v1138
        %v1140 = vlaneseq
        %v1141 = vshrl.u32 %v1140, 7
        %v1142 = vsub.s32 0, %v1141
        %v1143 = vrot.slane %v1111, %v1142
        %v1144 = vmul.f32 %v444, %v1115
        %v1145 = vmul.f32 %v449, %v1119
        %v1146 = vmul.f32 %v454, %v1123
        %v1147 = vmul.f32 %v459, %v1127
        %v1148 = vmul.f32 %v464, %v1131
        %v1149 = vmul.f32 %v469, %v1135
        %v1150 = vmul.f32 %v474, %v1139
        %v1151 = vmul.f32 %v479, %v1143
        %v1152 = vadd.f32 %v1144, 0.0
        %v1153 = vadd.f32 %v1145, 0.0
        %v1154 = vadd.f32 %v1146, 0.0
        %v1155 = vadd.f32 %v1147, 0.0
        %v1156 = vadd.f32 %v1148, 0.0
        %v1157 = vadd.f32 %v1149, 0.0
        %v1158 = vadd.f32 %v1150, 0.0
        %v1159 = vadd.f32 %v1151, 0.0
        %v1160 = vlaneseq
        %v1161 = vshrl.u32 %v1160, 7
        %v1162 = vsub.s32 1, %v1161
        %v1163 = vrot.slane %v1104, %v1162
        %v1164 = vlaneseq
        %v1165 = vshrl.u32 %v1164, 7
        %v1166 = vsub.s32 1, %v1165
        %v1167 = vrot.slane %v1105, %v1166
        %v1168 = vlaneseq
        %v1169 = vshrl.u32 %v1168, 7
        %v1170 = vsub.s32 1, %v1169
        %v1171 = vrot.slane %v1106, %v1170
        %v1172 = vlaneseq
        %v1173 = vshrl.u32 %v1172, 7
        %v1174 = vsub.s32 1, %v1173
        %v1175 = vrot.slane %v1107, %v1174
        %v1176 = vlaneseq
        %v1177 = vshrl.u32 %v1176, 7
        %v1178 = vsub.s32 1, %v1177
        %v1179 = vrot.slane %v1108, %v1178
        %v1180 = vlaneseq
        %v1181 = vshrl.u32 %v1180, 7
        %v1182 = vsub.s32 1, %v1181
        %v1183 = vrot.slane %v1109, %v1182
        %v1184 = vlaneseq
        %v1185 = vshrl.u32 %v1184, 7
        %v1186 = vsub.s32 1, %v1185
        %v1187 = vrot.slane %v1110, %v1186
        %v1188 = vlaneseq
        %v1189 = vshrl.u32 %v1188, 7
        %v1190 = vsub.s32 1, %v1189
        %v1191 = vrot.slane %v1111, %v1190
        %v1192 = vmul.f32 %v531, %v1163
        %v1193 = vmul.f32 %v535, %v1167
        %v1194 = vmul.f32 %v539, %v1171
        %v1195 = vmul.f32 %v543, %v1175
        %v1196 = vmul.f32 %v547, %v1179
        %v1197 = vmul.f32 %v551, %v1183
        %v1198 = vmul.f32 %v555, %v1187
        %v1199 = vmul.f32 %v559, %v1191
        %v1200 = vadd.f32 %v1152, %v1192
        %v1201 = vadd.f32 %v1153, %v1193
        %v1202 = vadd.f32 %v1154, %v1194
        %v1203 = vadd.f32 %v1155, %v1195
        %v1204 = vadd.f32 %v1156, %v1196
        %v1205 = vadd.f32 %v1157, %v1197
        %v1206 = vadd.f32 %v1158, %v1198
        %v1207 = vadd.f32 %v1159, %v1199
        %v1208 = vlaneseq
        %v1209 = vshrl.u32 %v1208, 7
        %v1210 = vsub.s32 2, %v1209
        %v1211 = vrot.slane %v1104, %v1210
        %v1212 = vlaneseq
        %v1213 = vshrl.u32 %v1212, 7
        %v1214 = vsub.s32 2, %v1213
        %v1215 = vrot.slane %v1105, %v1214
        %v1216 = vlaneseq
        %v1217 = vshrl.u32 %v1216, 7
        %v1218 = vsub.s32 2, %v1217
        %v1219 = vrot.slane %v1106, %v1218
        %v1220 = vlaneseq
        %v1221 = vshrl.u32 %v1220, 7
        %v1222 = vsub.s32 2, %v1221
        %v1223 = vrot.slane %v1107, %v1222
        %v1224 = vlaneseq
        %v1225 = vshrl.u32 %v1224, 7
        %v1226 = vsub.s32 2, %v1225
        %v1227 = vrot.slane %v1108, %v1226
        %v1228 = vlaneseq
        %v1229 = vshrl.u32 %v1228, 7
        %v1230 = vsub.s32 2, %v1229
        %v1231 = vrot.slane %v1109, %v1230
        %v1232 = vlaneseq
        %v1233 = vshrl.u32 %v1232, 7
        %v1234 = vsub.s32 2, %v1233
        %v1235 = vrot.slane %v1110, %v1234
        %v1236 = vlaneseq
        %v1237 = vshrl.u32 %v1236, 7
        %v1238 = vsub.s32 2, %v1237
        %v1239 = vrot.slane %v1111, %v1238
        %v1240 = vmul.f32 %v611, %v1211
        %v1241 = vmul.f32 %v615, %v1215
        %v1242 = vmul.f32 %v619, %v1219
        %v1243 = vmul.f32 %v623, %v1223
        %v1244 = vmul.f32 %v627, %v1227
        %v1245 = vmul.f32 %v631, %v1231
        %v1246 = vmul.f32 %v635, %v1235
        %v1247 = vmul.f32 %v639, %v1239
        %v1248 = vadd.f32 %v1200, %v1240
        %v1249 = vadd.f32 %v1201, %v1241
        %v1250 = vadd.f32 %v1202, %v1242
        %v1251 = vadd.f32 %v1203, %v1243
        %v1252 = vadd.f32 %v1204, %v1244
        %v1253 = vadd.f32 %v1205, %v1245
        %v1254 = vadd.f32 %v1206, %v1246
        %v1255 = vadd.f32 %v1207, %v1247
        %v1256 = vlaneseq
        %v1257 = vshrl.u32 %v1256, 7
        %v1258 = vsub.s32 3, %v1257
        %v1259 = vrot.slane %v1104, %v1258
        %v1260 = vlaneseq
        %v1261 = vshrl.u32 %v1260, 7
        %v1262 = vsub.s32 3, %v1261
        %v1263 = vrot.slane %v1105, %v1262
        %v1264 = vlaneseq
        %v1265 = vshrl.u32 %v1264, 7
        %v1266 = vsub.s32 3, %v1265
        %v1267 = vrot.slane %v1106, %v1266
        %v1268 = vlaneseq
        %v1269 = vshrl.u32 %v1268, 7
        %v1270 = vsub.s32 3, %v1269
        %v1271 = vrot.slane %v1107, %v1270
        %v1272 = vlaneseq
        %v1273 = vshrl.u32 %v1272, 7
        %v1274 = vsub.s32 3, %v1273
        %v1275 = vrot.slane %v1108, %v1274
        %v1276 = vlaneseq
        %v1277 = vshrl.u32 %v1276, 7
        %v1278 = vsub.s32 3, %v1277
        %v1279 = vrot.slane %v1109, %v1278
        %v1280 = vlaneseq
        %v1281 = vshrl.u32 %v1280, 7
        %v1282 = vsub.s32 3, %v1281
        %v1283 = vrot.slane %v1110, %v1282
        %v1284 = vlaneseq
        %v1285 = vshrl.u32 %v1284, 7
        %v1286 = vsub.s32 3, %v1285
        %v1287 = vrot.slane %v1111, %v1286
        %v1288 = vmul.f32 %v691, %v1259
        %v1289 = vmul.f32 %v695, %v1263
        %v1290 = vmul.f32 %v699, %v1267
        %v1291 = vmul.f32 %v703, %v1271
        %v1292 = vmul.f32 %v707, %v1275
        %v1293 = vmul.f32 %v711, %v1279
        %v1294 = vmul.f32 %v715, %v1283
        %v1295 = vmul.f32 %v719, %v1287
        %v1296 = vadd.f32 %v1248, %v1288
        %v1297 = vadd.f32 %v1249, %v1289
        %v1298 = vadd.f32 %v1250, %v1290
        %v1299 = vadd.f32 %v1251, %v1291
        %v1300 = vadd.f32 %v1252, %v1292
        %v1301 = vadd.f32 %v1253, %v1293
        %v1302 = vadd.f32 %v1254, %v1294
        %v1303 = vadd.f32 %v1255, %v1295
        %v1304 = vlaneseq
        %v1305 = vshrl.u32 %v1304, 7
        %v1306 = vsub.s32 4, %v1305
        %v1307 = vrot.slane %v1104, %v1306
        %v1308 = vlaneseq
        %v1309 = vshrl.u32 %v1308, 7
        %v1310 = vsub.s32 4, %v1309
        %v1311 = vrot.slane %v1105, %v1310
        %v1312 = vlaneseq
        %v1313 = vshrl.u32 %v1312, 7
        %v1314 = vsub.s32 4, %v1313
        %v1315 = vrot.slane %v1106, %v1314
        %v1316 = vlaneseq
        %v1317 = vshrl.u32 %v1316, 7
        %v1318 = vsub.s32 4, %v1317
        %v1319 = vrot.slane %v1107, %v1318
        %v1320 = vlaneseq
        %v1321 = vshrl.u32 %v1320, 7
        %v1322 = vsub.s32 4, %v1321
        %v1323 = vrot.slane %v1108, %v1322
        %v1324 = vlaneseq
        %v1325 = vshrl.u32 %v1324, 7
        %v1326 = vsub.s32 4, %v1325
        %v1327 = vrot.slane %v1109, %v1326
        %v1328 = vlaneseq
        %v1329 = vshrl.u32 %v1328, 7
        %v1330 = vsub.s32 4, %v1329
        %v1331 = vrot.slane %v1110, %v1330
        %v1332 = vlaneseq
        %v1333 = vshrl.u32 %v1332, 7
        %v1334 = vsub.s32 4, %v1333
        %v1335 = vrot.slane %v1111, %v1334
        %v1336 = vmul.f32 %v771, %v1307
        %v1337 = vmul.f32 %v775, %v1311
        %v1338 = vmul.f32 %v779, %v1315
        %v1339 = vmul.f32 %v783, %v1319
        %v1340 = vmul.f32 %v787, %v1323
        %v1341 = vmul.f32 %v791, %v1327
        %v1342 = vmul.f32 %v795, %v1331
        %v1343 = vmul.f32 %v799, %v1335
        %v1344 = vadd.f32 %v1296, %v1336
        %v1345 = vadd.f32 %v1297, %v1337
        %v1346 = vadd.f32 %v1298, %v1338
        %v1347 = vadd.f32 %v1299, %v1339
        %v1348 = vadd.f32 %v1300, %v1340
        %v1349 = vadd.f32 %v1301, %v1341
        %v1350 = vadd.f32 %v1302, %v1342
        %v1351 = vadd.f32 %v1303, %v1343
        %v1352 = vlaneseq
        %v1353 = vshrl.u32 %v1352, 7
        %v1354 = vsub.s32 5, %v1353
        %v1355 = vrot.slane %v1104, %v1354
        %v1356 = vlaneseq
        %v1357 = vshrl.u32 %v1356, 7
        %v1358 = vsub.s32 5, %v1357
        %v1359 = vrot.slane %v1105, %v1358
        %v1360 = vlaneseq
        %v1361 = vshrl.u32 %v1360, 7
        %v1362 = vsub.s32 5, %v1361
        %v1363 = vrot.slane %v1106, %v1362
        %v1364 = vlaneseq
        %v1365 = vshrl.u32 %v1364, 7
        %v1366 = vsub.s32 5, %v1365
        %v1367 = vrot.slane %v1107, %v1366
        %v1368 = vlaneseq
        %v1369 = vshrl.u32 %v1368, 7
        %v1370 = vsub.s32 5, %v1369
        %v1371 = vrot.slane %v1108, %v1370
        %v1372 = vlaneseq
        %v1373 = vshrl.u32 %v1372, 7
        %v1374 = vsub.s32 5, %v1373
        %v1375 = vrot.slane %v1109, %v1374
        %v1376 = vlaneseq
        %v1377 = vshrl.u32 %v1376, 7
        %v1378 = vsub.s32 5, %v1377
        %v1379 = vrot.slane %v1110, %v1378
        %v1380 = vlaneseq
        %v1381 = vshrl.u32 %v1380, 7
        %v1382 = vsub.s32 5, %v1381
        %v1383 = vrot.slane %v1111, %v1382
        %v1384 = vmul.f32 %v851, %v1355
        %v1385 = vmul.f32 %v855, %v1359
        %v1386 = vmul.f32 %v859, %v1363
        %v1387 = vmul.f32 %v863, %v1367
        %v1388 = vmul.f32 %v867, %v1371
        %v1389 = vmul.f32 %v871, %v1375
        %v1390 = vmul.f32 %v875, %v1379
        %v1391 = vmul.f32 %v879, %v1383
        %v1392 = vadd.f32 %v1344, %v1384
        %v1393 = vadd.f32 %v1345, %v1385
        %v1394 = vadd.f32 %v1346, %v1386
        %v1395 = vadd.f32 %v1347, %v1387
        %v1396 = vadd.f32 %v1348, %v1388
        %v1397 = vadd.f32 %v1349, %v1389
        %v1398 = vadd.f32 %v1350, %v1390
        %v1399 = vadd.f32 %v1351, %v1391
        %v1400 = vlaneseq
        %v1401 = vshrl.u32 %v1400, 7
        %v1402 = vsub.s32 6, %v1401
        %v1403 = vrot.slane %v1104, %v1402
        %v1404 = vlaneseq
        %v1405 = vshrl.u32 %v1404, 7
        %v1406 = vsub.s32 6, %v1405
        %v1407 = vrot.slane %v1105, %v1406
        %v1408 = vlaneseq
        %v1409 = vshrl.u32 %v1408, 7
        %v1410 = vsub.s32 6, %v1409
        %v1411 = vrot.slane %v1106, %v1410
        %v1412 = vlaneseq
        %v1413 = vshrl.u32 %v1412, 7
        %v1414 = vsub.s32 6, %v1413
        %v1415 = vrot.slane %v1107, %v1414
        %v1416 = vlaneseq
        %v1417 = vshrl.u32 %v1416, 7
        %v1418 = vsub.s32 6, %v1417
        %v1419 = vrot.slane %v1108, %v1418
        %v1420 = vlaneseq
        %v1421 = vshrl.u32 %v1420, 7
        %v1422 = vsub.s32 6, %v1421
        %v1423 = vrot.slane %v1109, %v1422
        %v1424 = vlaneseq
        %v1425 = vshrl.u32 %v1424, 7
        %v1426 = vsub.s32 6, %v1425
        %v1427 = vrot.slane %v1110, %v1426
        %v1428 = vlaneseq
        %v1429 = vshrl.u32 %v1428, 7
        %v1430 = vsub.s32 6, %v1429
        %v1431 = vrot.slane %v1111, %v1430
        %v1432 = vmul.f32 %v931, %v1403
        %v1433 = vmul.f32 %v935, %v1407
        %v1434 = vmul.f32 %v939, %v1411
        %v1435 = vmul.f32 %v943, %v1415
        %v1436 = vmul.f32 %v947, %v1419
        %v1437 = vmul.f32 %v951, %v1423
        %v1438 = vmul.f32 %v955, %v1427
        %v1439 = vmul.f32 %v959, %v1431
        %v1440 = vadd.f32 %v1392, %v1432
        %v1441 = vadd.f32 %v1393, %v1433
        %v1442 = vadd.f32 %v1394, %v1434
        %v1443 = vadd.f32 %v1395, %v1435
        %v1444 = vadd.f32 %v1396, %v1436
        %v1445 = vadd.f32 %v1397, %v1437
        %v1446 = vadd.f32 %v1398, %v1438
        %v1447 = vadd.f32 %v1399, %v1439
        %v1448 = vlaneseq
        %v1449 = vshrl.u32 %v1448, 7
        %v1450 = vsub.s32 7, %v1449
        %v1451 = vrot.slane %v1104, %v1450
        %v1452 = vlaneseq
        %v1453 = vshrl.u32 %v1452, 7
        %v1454 = vsub.s32 7, %v1453
        %v1455 = vrot.slane %v1105, %v1454
        %v1456 = vlaneseq
        %v1457 = vshrl.u32 %v1456, 7
        %v1458 = vsub.s32 7, %v1457
        %v1459 = vrot.slane %v1106, %v1458
        %v1460 = vlaneseq
        %v1461 = vshrl.u32 %v1460, 7
        %v1462 = vsub.s32 7, %v1461
        %v1463 = vrot.slane %v1107, %v1462
        %v1464 = vlaneseq
        %v1465 = vshrl.u32 %v1464, 7
        %v1466 = vsub.s32 7, %v1465
        %v1467 = vrot.slane %v1108, %v1466
        %v1468 = vlaneseq
        %v1469 = vshrl.u32 %v1468, 7
        %v1470 = vsub.s32 7, %v1469
        %v1471 = vrot.slane %v1109, %v1470
        %v1472 = vlaneseq
        %v1473 = vshrl.u32 %v1472, 7
        %v1474 = vsub.s32 7, %v1473
        %v1475 = vrot.slane %v1110, %v1474
        %v1476 = vlaneseq
        %v1477 = vshrl.u32 %v1476, 7
        %v1478 = vsub.s32 7, %v1477
        %v1479 = vrot.slane %v1111, %v1478
        %v1480 = vmul.f32 %v1011, %v1451
        %v1481 = vmul.f32 %v1015, %v1455
        %v1482 = vmul.f32 %v1019, %v1459
        %v1483 = vmul.f32 %v1023, %v1463
        %v1484 = vmul.f32 %v1027, %v1467
        %v1485 = vmul.f32 %v1031, %v1471
        %v1486 = vmul.f32 %v1035, %v1475
        %v1487 = vmul.f32 %v1039, %v1479
        %v1488 = vadd.f32 %v1440, %v1480
        %v1489 = vadd.f32 %v1441, %v1481
        %v1490 = vadd.f32 %v1442, %v1482
        %v1491 = vadd.f32 %v1443, %v1483
        %v1492 = vadd.f32 %v1444, %v1484
        %v1493 = vadd.f32 %v1445, %v1485
        %v1494 = vadd.f32 %v1446, %v1486
        %v1495 = vadd.f32 %v1447, %v1487
        %v1496 = vcombine.low %v1488, %v1490
        %v1497 = vcombine.high %v1488, %v1490
        %v1499 = vunpack.c.l.s4 1983009808
        %v1500 = vunpack.c.0.s8 %v1499
        %v1501 = vlaneseq
        %v1502 = vshrl.u32 %v1501, 7
        %v1503 = vsub.s32 %v1500, %v1502
        %v1504 = vrot.slane %v1496, %v1503
        %v1506 = vunpack.c.l.s4 1983009808
        %v1507 = vunpack.c.0.s8 %v1506
        %v1508 = vlaneseq
        %v1509 = vshrl.u32 %v1508, 7
        %v1510 = vsub.s32 %v1507, %v1509
        %v1511 = vrot.slane %v1497, %v1510
        %v1512 = vcombine.low %v1489, %v1491
        %v1513 = vcombine.high %v1489, %v1491
        %v1515 = vunpack.c.l.s4 1983009808
        %v1516 = vunpack.c.0.s8 %v1515
        %v1517 = vlaneseq
        %v1518 = vshrl.u32 %v1517, 7
        %v1519 = vsub.s32 %v1516, %v1518
        %v1520 = vrot.slane %v1512, %v1519
        %v1522 = vunpack.c.l.s4 1983009808
        %v1523 = vunpack.c.0.s8 %v1522
        %v1524 = vlaneseq
        %v1525 = vshrl.u32 %v1524, 7
        %v1526 = vsub.s32 %v1523, %v1525
        %v1527 = vrot.slane %v1513, %v1526
        %v1528 = vcombine.low %v1492, %v1494
        %v1529 = vcombine.high %v1492, %v1494
        %v1531 = vunpack.c.l.s4 1983009808
        %v1532 = vunpack.c.0.s8 %v1531
        %v1533 = vlaneseq
        %v1534 = vshrl.u32 %v1533, 7
        %v1535 = vsub.s32 %v1532, %v1534
        %v1536 = vrot.slane %v1528, %v1535
        %v1538 = vunpack.c.l.s4 1983009808
        %v1539 = vunpack.c.0.s8 %v1538
        %v1540 = vlaneseq
        %v1541 = vshrl.u32 %v1540, 7
        %v1542 = vsub.s32 %v1539, %v1541
        %v1543 = vrot.slane %v1529, %v1542
        %v1544 = vcombine.low %v1493, %v1495
        %v1545 = vcombine.high %v1493, %v1495
        %v1547 = vunpack.c.l.s4 1983009808
        %v1548 = vunpack.c.0.s8 %v1547
        %v1549 = vlaneseq
        %v1550 = vshrl.u32 %v1549, 7
        %v1551 = vsub.s32 %v1548, %v1550
        %v1552 = vrot.slane %v1544, %v1551
        %v1554 = vunpack.c.l.s4 1983009808
        %v1555 = vunpack.c.0.s8 %v1554
        %v1556 = vlaneseq
        %v1557 = vshrl.u32 %v1556, 7
        %v1558 = vsub.s32 %v1555, %v1557
        %v1559 = vrot.slane %v1545, %v1558
        %v1560 = vcombine.low %v1504, %v1520
        %v1561 = vcombine.high %v1504, %v1520
        %v1563 = vunpack.c.l.s4 1934713408
        %v1564 = vunpack.c.0.s8 %v1563
        %v1565 = vlaneseq
        %v1566 = vshrl.u32 %v1565, 7
        %v1567 = vsub.s32 %v1564, %v1566
        %v1568 = vrot.slane %v1560, %v1567
        %v1570 = vunpack.c.l.s4 1934713408
        %v1571 = vunpack.c.0.s8 %v1570
        %v1572 = vlaneseq
        %v1573 = vshrl.u32 %v1572, 7
        %v1574 = vsub.s32 %v1571, %v1573
        %v1575 = vrot.slane %v1561, %v1574
        %v1576 = vcombine.low %v1511, %v1527
        %v1577 = vcombine.high %v1511, %v1527
        %v1579 = vunpack.c.l.s4 1934713408
        %v1580 = vunpack.c.0.s8 %v1579
        %v1581 = vlaneseq
        %v1582 = vshrl.u32 %v1581, 7
        %v1583 = vsub.s32 %v1580, %v1582
        %v1584 = vrot.slane %v1576, %v1583
        %v1586 = vunpack.c.l.s4 1934713408
        %v1587 = vunpack.c.0.s8 %v1586
        %v1588 = vlaneseq
        %v1589 = vshrl.u32 %v1588, 7
        %v1590 = vsub.s32 %v1587, %v1589
        %v1591 = vrot.slane %v1577, %v1590
        %v1592 = vcombine.low %v1536, %v1552
        %v1593 = vcombine.high %v1536, %v1552
        %v1595 = vunpack.c.l.s4 1934713408
        %v1596 = vunpack.c.0.s8 %v1595
        %v1597 = vlaneseq
        %v1598 = vshrl.u32 %v1597, 7
        %v1599 = vsub.s32 %v1596, %v1598
        %v1600 = vrot.slane %v1592, %v1599
        %v1602 = vunpack.c.l.s4 1934713408
        %v1603 = vunpack.c.0.s8 %v1602
        %v1604 = vlaneseq
        %v1605 = vshrl.u32 %v1604, 7
        %v1606 = vsub.s32 %v1603, %v1605
        %v1607 = vrot.slane %v1593, %v1606
        %v1608 = vcombine.low %v1543, %v1559
        %v1609 = vcombine.high %v1543, %v1559
        %v1611 = vunpack.c.l.s4 1934713408
        %v1612 = vunpack.c.0.s8 %v1611
        %v1613 = vlaneseq
        %v1614 = vshrl.u32 %v1613, 7
        %v1615 = vsub.s32 %v1612, %v1614
        %v1616 = vrot.slane %v1608, %v1615
        %v1618 = vunpack.c.l.s4 1934713408
        %v1619 = vunpack.c.0.s8 %v1618
        %v1620 = vlaneseq
        %v1621 = vshrl.u32 %v1620, 7
        %v1622 = vsub.s32 %v1619, %v1621
        %v1623 = vrot.slane %v1609, %v1622
        %v1624 = vcombine.low %v1568, %v1600
        %v1625 = vcombine.high %v1568, %v1600
        %v1626 = vcombine.low %v1575, %v1607
        %v1627 = vcombine.high %v1575, %v1607
        %v1628 = vcombine.low %v1584, %v1616
        %v1629 = vcombine.high %v1584, %v1616
        %v1630 = vcombine.low %v1591, %v1623
        %v1631 = vcombine.high %v1591, %v1623
        %v1632 = vld [vmem:[#allocation5] sm:$0xff]
        %v1633 = vld [vmem:[#allocation5 + $0x8] sm:$0xff]
        %v1634 = vld [vmem:[#allocation5 + $0x10] sm:$0xff]
        %v1635 = vld [vmem:[#allocation5 + $0x18] sm:$0xff]
        %v1636 = vld [vmem:[#allocation5 + $0x20] sm:$0xff]
        %v1637 = vld [vmem:[#allocation5 + $0x28] sm:$0xff]
        %v1638 = vld [vmem:[#allocation5 + $0x30] sm:$0xff]
        %v1639 = vld [vmem:[#allocation5 + $0x38] sm:$0xff]
        %v1640 = vld [vmem:[#allocation5 + $0x40] sm:$0xff]
        %v1641 = vld [vmem:[#allocation5 + $0x48] sm:$0xff]
        %v1642 = vld [vmem:[#allocation5 + $0x50] sm:$0xff]
        %v1643 = vld [vmem:[#allocation5 + $0x58] sm:$0xff]
        %v1644 = vld [vmem:[#allocation5 + $0x60] sm:$0xff]
        %v1645 = vld [vmem:[#allocation5 + $0x68] sm:$0xff]
        %v1646 = vld [vmem:[#allocation5 + $0x70] sm:$0xff]
        %v1647 = vld [vmem:[#allocation5 + $0x78] sm:$0xff]
        %v1648 = vld [vmem:[#allocation5 + $0x80] sm:$0xff]
        %v1649 = vld [vmem:[#allocation5 + $0x88] sm:$0xff]
        %v1650 = vld [vmem:[#allocation5 + $0x90] sm:$0xff]
        %v1651 = vld [vmem:[#allocation5 + $0x98] sm:$0xff]
        %v1652 = vld [vmem:[#allocation5 + $0xa0] sm:$0xff]
        %v1653 = vld [vmem:[#allocation5 + $0xa8] sm:$0xff]
        %v1654 = vld [vmem:[#allocation5 + $0xb0] sm:$0xff]
        %v1655 = vld [vmem:[#allocation5 + $0xb8] sm:$0xff]
        %v1656 = vld [vmem:[#allocation5 + $0xc0] sm:$0xff]
        %v1657 = vld [vmem:[#allocation5 + $0xc8] sm:$0xff]
        %v1658 = vld [vmem:[#allocation5 + $0xd0] sm:$0xff]
        %v1659 = vld [vmem:[#allocation5 + $0xd8] sm:$0xff]
        %v1660 = vld [vmem:[#allocation5 + $0xe0] sm:$0xff]
        %v1661 = vld [vmem:[#allocation5 + $0xe8] sm:$0xff]
        %v1662 = vld [vmem:[#allocation5 + $0xf0] sm:$0xff]
        %v1663 = vld [vmem:[#allocation5 + $0xf8] sm:$0xff]
        %v1664 = vld [vmem:[#allocation5 + $0x100] sm:$0xff]
        %v1665 = vld [vmem:[#allocation5 + $0x108] sm:$0xff]
        %v1666 = vld [vmem:[#allocation5 + $0x110] sm:$0xff]
        %v1667 = vld [vmem:[#allocation5 + $0x118] sm:$0xff]
        %v1668 = vld [vmem:[#allocation5 + $0x120] sm:$0xff]
        %v1669 = vld [vmem:[#allocation5 + $0x128] sm:$0xff]
        %v1670 = vld [vmem:[#allocation5 + $0x130] sm:$0xff]
        %v1671 = vld [vmem:[#allocation5 + $0x138] sm:$0xff]
        %v1672 = vld [vmem:[#allocation5 + $0x140] sm:$0xff]
        %v1673 = vld [vmem:[#allocation5 + $0x148] sm:$0xff]
        %v1674 = vld [vmem:[#allocation5 + $0x150] sm:$0xff]
        %v1675 = vld [vmem:[#allocation5 + $0x158] sm:$0xff]
        %v1676 = vld [vmem:[#allocation5 + $0x160] sm:$0xff]
        %v1677 = vld [vmem:[#allocation5 + $0x168] sm:$0xff]
        %v1678 = vld [vmem:[#allocation5 + $0x170] sm:$0xff]
        %v1679 = vld [vmem:[#allocation5 + $0x178] sm:$0xff]
        %v1680 = vld [vmem:[#allocation5 + $0x180] sm:$0xff]
        %v1681 = vld [vmem:[#allocation5 + $0x188] sm:$0xff]
        %v1682 = vld [vmem:[#allocation5 + $0x190] sm:$0xff]
        %v1683 = vld [vmem:[#allocation5 + $0x198] sm:$0xff]
        %v1684 = vld [vmem:[#allocation5 + $0x1a0] sm:$0xff]
        %v1685 = vld [vmem:[#allocation5 + $0x1a8] sm:$0xff]
        %v1686 = vld [vmem:[#allocation5 + $0x1b0] sm:$0xff]
        %v1687 = vld [vmem:[#allocation5 + $0x1b8] sm:$0xff]
        %v1688 = vld [vmem:[#allocation5 + $0x1c0] sm:$0xff]
        %v1689 = vld [vmem:[#allocation5 + $0x1c8] sm:$0xff]
        %v1690 = vld [vmem:[#allocation5 + $0x1d0] sm:$0xff]
        %v1691 = vld [vmem:[#allocation5 + $0x1d8] sm:$0xff]
        %v1692 = vld [vmem:[#allocation5 + $0x1e0] sm:$0xff]
        %v1693 = vld [vmem:[#allocation5 + $0x1e8] sm:$0xff]
        %v1694 = vld [vmem:[#allocation5 + $0x1f0] sm:$0xff]
        %v1695 = vld [vmem:[#allocation5 + $0x1f8] sm:$0xff]
        %v1696 = vld [vmem:[#allocation5 + $0x200] sm:$0xff]
        %v1697 = vld [vmem:[#allocation5 + $0x208] sm:$0xff]
        %v1698 = vld [vmem:[#allocation5 + $0x210] sm:$0xff]
        %v1699 = vld [vmem:[#allocation5 + $0x218] sm:$0xff]
        %v1700 = vld [vmem:[#allocation5 + $0x220] sm:$0xff]
        %v1701 = vld [vmem:[#allocation5 + $0x228] sm:$0xff]
        %v1702 = vld [vmem:[#allocation5 + $0x230] sm:$0xff]
        %v1703 = vld [vmem:[#allocation5 + $0x238] sm:$0xff]
        %v1704 = vld [vmem:[#allocation5 + $0x240] sm:$0xff]
        %v1705 = vld [vmem:[#allocation5 + $0x248] sm:$0xff]
        %v1706 = vld [vmem:[#allocation5 + $0x250] sm:$0xff]
        %v1707 = vld [vmem:[#allocation5 + $0x258] sm:$0xff]
        %v1708 = vld [vmem:[#allocation5 + $0x260] sm:$0xff]
        %v1709 = vld [vmem:[#allocation5 + $0x268] sm:$0xff]
        %v1710 = vld [vmem:[#allocation5 + $0x270] sm:$0xff]
        %v1711 = vld [vmem:[#allocation5 + $0x278] sm:$0xff]
        %v1712 = vld [vmem:[#allocation5 + $0x280] sm:$0xff]
        %v1713 = vld [vmem:[#allocation5 + $0x288] sm:$0xff]
        %v1714 = vld [vmem:[#allocation5 + $0x290] sm:$0xff]
        %v1715 = vld [vmem:[#allocation5 + $0x298] sm:$0xff]
        %v1716 = vld [vmem:[#allocation5 + $0x2a0] sm:$0xff]
        %v1717 = vld [vmem:[#allocation5 + $0x2a8] sm:$0xff]
        %v1718 = vld [vmem:[#allocation5 + $0x2b0] sm:$0xff]
        %v1719 = vld [vmem:[#allocation5 + $0x2b8] sm:$0xff]
        %v1720 = vld [vmem:[#allocation5 + $0x2c0] sm:$0xff]
        %v1721 = vld [vmem:[#allocation5 + $0x2c8] sm:$0xff]
        %v1722 = vld [vmem:[#allocation5 + $0x2d0] sm:$0xff]
        %v1723 = vld [vmem:[#allocation5 + $0x2d8] sm:$0xff]
        %v1724 = vld [vmem:[#allocation5 + $0x2e0] sm:$0xff]
        %v1725 = vld [vmem:[#allocation5 + $0x2e8] sm:$0xff]
        %v1726 = vld [vmem:[#allocation5 + $0x2f0] sm:$0xff]
        %v1727 = vld [vmem:[#allocation5 + $0x2f8] sm:$0xff]
        %v1728 = vld [vmem:[#allocation5 + $0x300] sm:$0xff]
        %v1729 = vld [vmem:[#allocation5 + $0x308] sm:$0xff]
        %v1730 = vld [vmem:[#allocation5 + $0x310] sm:$0xff]
        %v1731 = vld [vmem:[#allocation5 + $0x318] sm:$0xff]
        %v1732 = vld [vmem:[#allocation5 + $0x320] sm:$0xff]
        %v1733 = vld [vmem:[#allocation5 + $0x328] sm:$0xff]
        %v1734 = vld [vmem:[#allocation5 + $0x330] sm:$0xff]
        %v1735 = vld [vmem:[#allocation5 + $0x338] sm:$0xff]
        %v1736 = vld [vmem:[#allocation5 + $0x340] sm:$0xff]
        %v1737 = vld [vmem:[#allocation5 + $0x348] sm:$0xff]
        %v1738 = vld [vmem:[#allocation5 + $0x350] sm:$0xff]
        %v1739 = vld [vmem:[#allocation5 + $0x358] sm:$0xff]
        %v1740 = vld [vmem:[#allocation5 + $0x360] sm:$0xff]
        %v1741 = vld [vmem:[#allocation5 + $0x368] sm:$0xff]
        %v1742 = vld [vmem:[#allocation5 + $0x370] sm:$0xff]
        %v1743 = vld [vmem:[#allocation5 + $0x378] sm:$0xff]
        %v1744 = vld [vmem:[#allocation5 + $0x380] sm:$0xff]
        %v1745 = vld [vmem:[#allocation5 + $0x388] sm:$0xff]
        %v1746 = vld [vmem:[#allocation5 + $0x390] sm:$0xff]
        %v1747 = vld [vmem:[#allocation5 + $0x398] sm:$0xff]
        %v1748 = vld [vmem:[#allocation5 + $0x3a0] sm:$0xff]
        %v1749 = vld [vmem:[#allocation5 + $0x3a8] sm:$0xff]
        %v1750 = vld [vmem:[#allocation5 + $0x3b0] sm:$0xff]
        %v1751 = vld [vmem:[#allocation5 + $0x3b8] sm:$0xff]
        %v1752 = vld [vmem:[#allocation5 + $0x3c0] sm:$0xff]
        %v1753 = vld [vmem:[#allocation5 + $0x3c8] sm:$0xff]
        %v1754 = vld [vmem:[#allocation5 + $0x3d0] sm:$0xff]
        %v1755 = vld [vmem:[#allocation5 + $0x3d8] sm:$0xff]
        %v1756 = vld [vmem:[#allocation5 + $0x3e0] sm:$0xff]
        %v1757 = vld [vmem:[#allocation5 + $0x3e8] sm:$0xff]
        %v1758 = vld [vmem:[#allocation5 + $0x3f0] sm:$0xff]
        %v1759 = vld [vmem:[#allocation5 + $0x3f8] sm:$0xff]
        %v1760 = vld [vmem:[%s5] sm:$0x1]
        %v1762 = vlaneseq
        %v1763 = vshrl.u32 %v1762, 7
        %v1764 = vsub.s32 0, %v1763
        %v1765 = vrot.slane %v1760, %v1764
        %1767 = vmatprep.subr.mxu0 0.0
        %1768 = vmatpush1.msra.mxu0 %v1632
        %1769 = vmatprep.subr.mxu0 0.0
        %1770 = vmatpush1.msra.mxu0 %v1633
        %1771 = vmatprep.subr.mxu0 0.0
        %1772 = vmatpush1.msra.mxu0 %v1634
        %1773 = vmatprep.subr.mxu0 0.0
        %1774 = vmatpush1.msra.mxu0 %v1635
        %1775 = vmatprep.subr.mxu0 0.0
        %1776 = vmatpush1.msra.mxu0 %v1636
        %1777 = vmatprep.subr.mxu0 0.0
        %1778 = vmatpush1.msra.mxu0 %v1637
        %1779 = vmatprep.subr.mxu0 0.0
        %1780 = vmatpush1.msra.mxu0 %v1638
        %1781 = vmatprep.subr.mxu0 0.0
        %1782 = vmatpush1.msra.mxu0 %v1639
        %1783 = vmatprep.subr.mxu0 0.0
        %1784 = vmatpush1.msra.mxu0 %v1640
        %1785 = vmatprep.subr.mxu0 0.0
        %1786 = vmatpush1.msra.mxu0 %v1641
        %1787 = vmatprep.subr.mxu0 0.0
        %1788 = vmatpush1.msra.mxu0 %v1642
        %1789 = vmatprep.subr.mxu0 0.0
        %1790 = vmatpush1.msra.mxu0 %v1643
        %1791 = vmatprep.subr.mxu0 0.0
        %1792 = vmatpush1.msra.mxu0 %v1644
        %1793 = vmatprep.subr.mxu0 0.0
        %1794 = vmatpush1.msra.mxu0 %v1645
        %1795 = vmatprep.subr.mxu0 0.0
        %1796 = vmatpush1.msra.mxu0 %v1646
        %1797 = vmatprep.subr.mxu0 0.0
        %1798 = vmatpush1.msra.mxu0 %v1647
        %1799 = vmatprep.subr.mxu0 0.0
        %1800 = vmatpush1.msra.mxu0 %v1648
        %1801 = vmatprep.subr.mxu0 0.0
        %1802 = vmatpush1.msra.mxu0 %v1649
        %1803 = vmatprep.subr.mxu0 0.0
        %1804 = vmatpush1.msra.mxu0 %v1650
        %1805 = vmatprep.subr.mxu0 0.0
        %1806 = vmatpush1.msra.mxu0 %v1651
        %1807 = vmatprep.subr.mxu0 0.0
        %1808 = vmatpush1.msra.mxu0 %v1652
        %1809 = vmatprep.subr.mxu0 0.0
        %1810 = vmatpush1.msra.mxu0 %v1653
        %1811 = vmatprep.subr.mxu0 0.0
        %1812 = vmatpush1.msra.mxu0 %v1654
        %1813 = vmatprep.subr.mxu0 0.0
        %1814 = vmatpush1.msra.mxu0 %v1655
        %1815 = vmatprep.subr.mxu0 0.0
        %1816 = vmatpush1.msra.mxu0 %v1656
        %1817 = vmatprep.subr.mxu0 0.0
        %1818 = vmatpush1.msra.mxu0 %v1657
        %1819 = vmatprep.subr.mxu0 0.0
        %1820 = vmatpush1.msra.mxu0 %v1658
        %1821 = vmatprep.subr.mxu0 0.0
        %1822 = vmatpush1.msra.mxu0 %v1659
        %1823 = vmatprep.subr.mxu0 0.0
        %1824 = vmatpush1.msra.mxu0 %v1660
        %1825 = vmatprep.subr.mxu0 0.0
        %1826 = vmatpush1.msra.mxu0 %v1661
        %1827 = vmatprep.subr.mxu0 0.0
        %1828 = vmatpush1.msra.mxu0 %v1662
        %1829 = vmatprep.subr.mxu0 0.0
        %1830 = vmatpush1.msra.mxu0 %v1663
        %1831 = vmatprep.mubr.f32.mxu0 %v1625
        %1832 = vmatmul.mubr.f32.gmra.mrb[0].mxu0 %v1624
        %v1833 = vpop.f32.mrb[0].mxu0
        %v1834 = vadd.f32 %v1765, %v1833
        %v1835 = vpop.f32.mrb[0].mxu0
        %1836 = vdwg.mxu0
        %1837 = vmatprep.subr.mxu0 0.0
        %1838 = vmatpush1.msra.mxu0 %v1664
        %1839 = vmatprep.subr.mxu0 0.0
        %1840 = vmatpush1.msra.mxu0 %v1665
        %1841 = vmatprep.subr.mxu0 0.0
        %1842 = vmatpush1.msra.mxu0 %v1666
        %1843 = vmatprep.subr.mxu0 0.0
        %1844 = vmatpush1.msra.mxu0 %v1667
        %1845 = vmatprep.subr.mxu0 0.0
        %1846 = vmatpush1.msra.mxu0 %v1668
        %1847 = vmatprep.subr.mxu0 0.0
        %1848 = vmatpush1.msra.mxu0 %v1669
        %1849 = vmatprep.subr.mxu0 0.0
        %1850 = vmatpush1.msra.mxu0 %v1670
        %1851 = vmatprep.subr.mxu0 0.0
        %1852 = vmatpush1.msra.mxu0 %v1671
        %1853 = vmatprep.subr.mxu0 0.0
        %1854 = vmatpush1.msra.mxu0 %v1672
        %1855 = vmatprep.subr.mxu0 0.0
        %1856 = vmatpush1.msra.mxu0 %v1673
        %1857 = vmatprep.subr.mxu0 0.0
        %1858 = vmatpush1.msra.mxu0 %v1674
        %1859 = vmatprep.subr.mxu0 0.0
        %1860 = vmatpush1.msra.mxu0 %v1675
        %1861 = vmatprep.subr.mxu0 0.0
        %1862 = vmatpush1.msra.mxu0 %v1676
        %1863 = vmatprep.subr.mxu0 0.0
        %1864 = vmatpush1.msra.mxu0 %v1677
        %1865 = vmatprep.subr.mxu0 0.0
        %1866 = vmatpush1.msra.mxu0 %v1678
        %1867 = vmatprep.subr.mxu0 0.0
        %1868 = vmatpush1.msra.mxu0 %v1679
        %1869 = vmatprep.subr.mxu0 0.0
        %1870 = vmatpush1.msra.mxu0 %v1680
        %1871 = vmatprep.subr.mxu0 0.0
        %1872 = vmatpush1.msra.mxu0 %v1681
        %1873 = vmatprep.subr.mxu0 0.0
        %1874 = vmatpush1.msra.mxu0 %v1682
        %1875 = vmatprep.subr.mxu0 0.0
        %1876 = vmatpush1.msra.mxu0 %v1683
        %1877 = vmatprep.subr.mxu0 0.0
        %1878 = vmatpush1.msra.mxu0 %v1684
        %1879 = vmatprep.subr.mxu0 0.0
        %1880 = vmatpush1.msra.mxu0 %v1685
        %1881 = vmatprep.subr.mxu0 0.0
        %1882 = vmatpush1.msra.mxu0 %v1686
        %1883 = vmatprep.subr.mxu0 0.0
        %1884 = vmatpush1.msra.mxu0 %v1687
        %1885 = vmatprep.subr.mxu0 0.0
        %1886 = vmatpush1.msra.mxu0 %v1688
        %1887 = vmatprep.subr.mxu0 0.0
        %1888 = vmatpush1.msra.mxu0 %v1689
        %1889 = vmatprep.subr.mxu0 0.0
        %1890 = vmatpush1.msra.mxu0 %v1690
        %1891 = vmatprep.subr.mxu0 0.0
        %1892 = vmatpush1.msra.mxu0 %v1691
        %1893 = vmatprep.subr.mxu0 0.0
        %1894 = vmatpush1.msra.mxu0 %v1692
        %1895 = vmatprep.subr.mxu0 0.0
        %1896 = vmatpush1.msra.mxu0 %v1693
        %1897 = vmatprep.subr.mxu0 0.0
        %1898 = vmatpush1.msra.mxu0 %v1694
        %1899 = vmatprep.subr.mxu0 0.0
        %1900 = vmatpush1.msra.mxu0 %v1695
        %1901 = vmatprep.mubr.f32.mxu0 %v1627
        %1902 = vmatmul.mubr.f32.gmra.mrb[0].mxu0 %v1626
        %v1903 = vpop.f32.mrb[0].mxu0
        %v1904 = vadd.f32 %v1834, %v1903
        %v1905 = vpop.f32.mrb[0].mxu0
        %1906 = vdwg.mxu0
        %1907 = vmatprep.subr.mxu0 0.0
        %1908 = vmatpush1.msra.mxu0 %v1696
        %1909 = vmatprep.subr.mxu0 0.0
        %1910 = vmatpush1.msra.mxu0 %v1697
        %1911 = vmatprep.subr.mxu0 0.0
        %1912 = vmatpush1.msra.mxu0 %v1698
        %1913 = vmatprep.subr.mxu0 0.0
        %1914 = vmatpush1.msra.mxu0 %v1699
        %1915 = vmatprep.subr.mxu0 0.0
        %1916 = vmatpush1.msra.mxu0 %v1700
        %1917 = vmatprep.subr.mxu0 0.0
        %1918 = vmatpush1.msra.mxu0 %v1701
        %1919 = vmatprep.subr.mxu0 0.0
        %1920 = vmatpush1.msra.mxu0 %v1702
        %1921 = vmatprep.subr.mxu0 0.0
        %1922 = vmatpush1.msra.mxu0 %v1703
        %1923 = vmatprep.subr.mxu0 0.0
        %1924 = vmatpush1.msra.mxu0 %v1704
        %1925 = vmatprep.subr.mxu0 0.0
        %1926 = vmatpush1.msra.mxu0 %v1705
        %1927 = vmatprep.subr.mxu0 0.0
        %1928 = vmatpush1.msra.mxu0 %v1706
        %1929 = vmatprep.subr.mxu0 0.0
        %1930 = vmatpush1.msra.mxu0 %v1707
        %1931 = vmatprep.subr.mxu0 0.0
        %1932 = vmatpush1.msra.mxu0 %v1708
        %1933 = vmatprep.subr.mxu0 0.0
        %1934 = vmatpush1.msra.mxu0 %v1709
        %1935 = vmatprep.subr.mxu0 0.0
        %1936 = vmatpush1.msra.mxu0 %v1710
        %1937 = vmatprep.subr.mxu0 0.0
        %1938 = vmatpush1.msra.mxu0 %v1711
        %1939 = vmatprep.subr.mxu0 0.0
        %1940 = vmatpush1.msra.mxu0 %v1712
        %1941 = vmatprep.subr.mxu0 0.0
        %1942 = vmatpush1.msra.mxu0 %v1713
        %1943 = vmatprep.subr.mxu0 0.0
        %1944 = vmatpush1.msra.mxu0 %v1714
        %1945 = vmatprep.subr.mxu0 0.0
        %1946 = vmatpush1.msra.mxu0 %v1715
        %1947 = vmatprep.subr.mxu0 0.0
        %1948 = vmatpush1.msra.mxu0 %v1716
        %1949 = vmatprep.subr.mxu0 0.0
        %1950 = vmatpush1.msra.mxu0 %v1717
        %1951 = vmatprep.subr.mxu0 0.0
        %1952 = vmatpush1.msra.mxu0 %v1718
        %1953 = vmatprep.subr.mxu0 0.0
        %1954 = vmatpush1.msra.mxu0 %v1719
        %1955 = vmatprep.subr.mxu0 0.0
        %1956 = vmatpush1.msra.mxu0 %v1720
        %1957 = vmatprep.subr.mxu0 0.0
        %1958 = vmatpush1.msra.mxu0 %v1721
        %1959 = vmatprep.subr.mxu0 0.0
        %1960 = vmatpush1.msra.mxu0 %v1722
        %1961 = vmatprep.subr.mxu0 0.0
        %1962 = vmatpush1.msra.mxu0 %v1723
        %1963 = vmatprep.subr.mxu0 0.0
        %1964 = vmatpush1.msra.mxu0 %v1724
        %1965 = vmatprep.subr.mxu0 0.0
        %1966 = vmatpush1.msra.mxu0 %v1725
        %1967 = vmatprep.subr.mxu0 0.0
        %1968 = vmatpush1.msra.mxu0 %v1726
        %1969 = vmatprep.subr.mxu0 0.0
        %1970 = vmatpush1.msra.mxu0 %v1727
        %1971 = vmatprep.mubr.f32.mxu0 %v1629
        %1972 = vmatmul.mubr.f32.gmra.mrb[0].mxu0 %v1628
        %v1973 = vpop.f32.mrb[0].mxu0
        %v1974 = vadd.f32 %v1904, %v1973
        %v1975 = vpop.f32.mrb[0].mxu0
        %1976 = vdwg.mxu0
        %1977 = vmatprep.subr.mxu0 0.0
        %1978 = vmatpush1.msra.mxu0 %v1728
        %1979 = vmatprep.subr.mxu0 0.0
        %1980 = vmatpush1.msra.mxu0 %v1729
        %1981 = vmatprep.subr.mxu0 0.0
        %1982 = vmatpush1.msra.mxu0 %v1730
        %1983 = vmatprep.subr.mxu0 0.0
        %1984 = vmatpush1.msra.mxu0 %v1731
        %1985 = vmatprep.subr.mxu0 0.0
        %1986 = vmatpush1.msra.mxu0 %v1732
        %1987 = vmatprep.subr.mxu0 0.0
        %1988 = vmatpush1.msra.mxu0 %v1733
        %1989 = vmatprep.subr.mxu0 0.0
        %1990 = vmatpush1.msra.mxu0 %v1734
        %1991 = vmatprep.subr.mxu0 0.0
        %1992 = vmatpush1.msra.mxu0 %v1735
        %1993 = vmatprep.subr.mxu0 0.0
        %1994 = vmatpush1.msra.mxu0 %v1736
        %1995 = vmatprep.subr.mxu0 0.0
        %1996 = vmatpush1.msra.mxu0 %v1737
        %1997 = vmatprep.subr.mxu0 0.0
        %1998 = vmatpush1.msra.mxu0 %v1738
        %1999 = vmatprep.subr.mxu0 0.0
        %2000 = vmatpush1.msra.mxu0 %v1739
        %2001 = vmatprep.subr.mxu0 0.0
        %2002 = vmatpush1.msra.mxu0 %v1740
        %2003 = vmatprep.subr.mxu0 0.0
        %2004 = vmatpush1.msra.mxu0 %v1741
        %2005 = vmatprep.subr.mxu0 0.0
        %2006 = vmatpush1.msra.mxu0 %v1742
        %2007 = vmatprep.subr.mxu0 0.0
        %2008 = vmatpush1.msra.mxu0 %v1743
        %2009 = vmatprep.subr.mxu0 0.0
        %2010 = vmatpush1.msra.mxu0 %v1744
        %2011 = vmatprep.subr.mxu0 0.0
        %2012 = vmatpush1.msra.mxu0 %v1745
        %2013 = vmatprep.subr.mxu0 0.0
        %2014 = vmatpush1.msra.mxu0 %v1746
        %2015 = vmatprep.subr.mxu0 0.0
        %2016 = vmatpush1.msra.mxu0 %v1747
        %2017 = vmatprep.subr.mxu0 0.0
        %2018 = vmatpush1.msra.mxu0 %v1748
        %2019 = vmatprep.subr.mxu0 0.0
        %2020 = vmatpush1.msra.mxu0 %v1749
        %2021 = vmatprep.subr.mxu0 0.0
        %2022 = vmatpush1.msra.mxu0 %v1750
        %2023 = vmatprep.subr.mxu0 0.0
        %2024 = vmatpush1.msra.mxu0 %v1751
        %2025 = vmatprep.subr.mxu0 0.0
        %2026 = vmatpush1.msra.mxu0 %v1752
        %2027 = vmatprep.subr.mxu0 0.0
        %2028 = vmatpush1.msra.mxu0 %v1753
        %2029 = vmatprep.subr.mxu0 0.0
        %2030 = vmatpush1.msra.mxu0 %v1754
        %2031 = vmatprep.subr.mxu0 0.0
        %2032 = vmatpush1.msra.mxu0 %v1755
        %2033 = vmatprep.subr.mxu0 0.0
        %2034 = vmatpush1.msra.mxu0 %v1756
        %2035 = vmatprep.subr.mxu0 0.0
        %2036 = vmatpush1.msra.mxu0 %v1757
        %2037 = vmatprep.subr.mxu0 0.0
        %2038 = vmatpush1.msra.mxu0 %v1758
        %2039 = vmatprep.subr.mxu0 0.0
        %2040 = vmatpush1.msra.mxu0 %v1759
        %2041 = vmatprep.mubr.f32.mxu0 %v1631
        %2042 = vmatmul.mubr.f32.gmra.mrb[0].mxu0 %v1630
        %v2043 = vpop.f32.mrb[0].mxu0
        %v2044 = vadd.f32 %v1974, %v2043
        %v2045 = vpop.f32.mrb[0].mxu0
        %2046 = vdwg.mxu0
        %2047 = vst [vmem:[%s291] sm:$0xff] %v2044
        %s2048 = sand.u32 %s166, 1
        %s2049 = scalar_lea.sflag [#allocation4], %s2048
        %s2050 = sand.u32 %s166, 1
        %s2051 = smul.addr %s2050, 8
        %s2052 = scalar_lea.vmem [#allocation7], %s2051
        // Predicated region
        $region53: #{tpu_custom_call.1} parent=43 // pred_check
          %p2053 = pneg %p176
        $region54: #{tpu_custom_call.1} parent=43 // pred_check_branch
          %2055 = sbr.rel (%p2053) target = $region56
        $region55: #{tpu_custom_call.1} parent=43 // pred_region
          %s2057 = ssub.s32 128, 128
          %2058 = vsyncadd %s2049, %s2057
          %s2059 = smul.addr %s22, 128
          %s2060 = scalar_lea.hbm %s6, %s2059
          %s2062 = sshll.u32 %s2052, 4
          %s2063 = int_to_ptr.vmem [resolvable:$true] %s2062
          %2065 = dma.vmem_to_hbm [thread:$0]  %s2063, 128, %s2060, %s2049
        $region56: #{tpu_custom_call.1} parent=43 // pred_fallthru
          _
      $region44: #{tpu_custom_call.1} parent=5 // pred_fallthru
        _
      %p2066 = scmp.le.s32.totalorder 2, %s17
      // Predicated region
      $region57: #{tpu_custom_call.1} parent=5 // pred_check
        %p2067 = pneg %p2066
      $region58: #{tpu_custom_call.1} parent=5 // pred_check_branch
        %2069 = sbr.rel (%p2067) target = $region60
      $region59: #{tpu_custom_call.1} parent=5 // pred_region
        %s2070 = ssub.s32 %s17, 2
        // Predicated region
        $region61: #{tpu_custom_call.1} parent=59 // pred_check
          %p2071 = pneg %p182
        $region62: #{tpu_custom_call.1} parent=59 // pred_check_branch
          %2073 = sbr.rel (%p2071) target = $region64
        $region63: #{tpu_custom_call.1} parent=59 // pred_region
          %s2074 = sand.u32 %s167, 1
          %s2075 = scalar_lea.sflag [#allocation4], %s2074
          %s2076 = sand.u32 %s167, 1
          %s2077 = smul.addr %s2076, 8
          %s2078 = scalar_lea.vmem [#allocation7], %s2077
          %2079 = dma.done %s2075, 128
        $region64: #{tpu_custom_call.1} parent=59 // pred_fallthru
          _
      $region60: #{tpu_custom_call.1} parent=5 // pred_fallthru
        _
    $region6: #{tpu_custom_call.1} parent=1 // loop_footer
      %s21 = sadd.s32 1, %s17
    $region7: #{tpu_custom_call.1} parent=1 // loop_footer_branch
      %16 = sbr.rel target = $region3
    $region8: #{tpu_custom_call.1} parent=1 // loop_exit
      _
    %2080 = vsyncpa [#allocation3], 1
    %s2081 = scalar_lea.sflag [#allocation3], 1
    %2082 = vsyncpa %s2081, 1
    %2083 = vsyncpa [#allocation6], 1
    %2084 = vsyncpa [#allocation4], 1
    %s2085 = scalar_lea.sflag [#allocation4], 1
    %2086 = vsyncpa %s2085, 1

</llo_original>
